<compile_context>
chip_gen: v7x
topology: tpu7x:2x2x1
jax: 0.10.0
libtpu: 0.0.40
codegen_flags: <defaults>
</compile_context>

<pallas_src>
import functools

import jax
import jax.numpy as jnp
import numpy as np
from jax.experimental import pallas as pl
from jax.experimental.pallas import tpu as pltpu


# ------------------------------ fused kernel -------------------------------

def _fused_forward_kernel(xim_ref, w1_ref, b1_ref, w2_ref, b2_ref, m3_ref, b3_ref,
                          a_ref, p_ref, wl_ref, bl_ref, o_ref,
                          *, nb, K, L, eps, n_inv):
    f32 = jnp.float32

    # ---- conv1 (5x5, stride (1,2), pad (2,2)) + ReLU: ONE matmul -----------
    # The 5 H-taps are in the im2col lanes of xim; W-taps/stride/pad are folded
    # into w1cat.  Row layout: r = n*K + k.  Lane layout: w*32 + o.
    y1 = jnp.maximum(
        jnp.dot(xim_ref[...], w1_ref[...], preferred_element_type=f32)
        + b1_ref[...], 0.0)                                        # (M, L)

    # ---- conv2 (3x3, stride 1, 'same') + ReLU: ONE matmul ------------------
    # Per-instance +/-1-row shifted copies with zero halo (cheap sublane
    # slice/concat copies, no shift matmuls), 3 H-taps folded along lanes.
    zrow = jnp.zeros((1, L), f32)
    dn_parts, up_parts = [], []
    for n in range(nb):
        blk = y1[n * K:(n + 1) * K, :]
        dn_parts += [zrow, blk[:K - 1, :]]     # row k <- y1[k-1] (0 at k=0)
        up_parts += [blk[1:, :], zrow]         # row k <- y1[k+1] (0 at k=K-1)
    y1_dn = jnp.concatenate(dn_parts, axis=0)                      # (M, L)
    y1_up = jnp.concatenate(up_parts, axis=0)                      # (M, L)
    lhs2 = jnp.concatenate([y1_dn, y1, y1_up], axis=1)             # (M, 3L)
    y2 = jnp.maximum(
        jnp.dot(lhs2, w2_ref[...], preferred_element_type=f32)
        + b2_ref[...], 0.0)                                        # (M, L)

    # ---- conv3d (1->1, (5,1,1), stride (3,1,1)) as block-diag channel mix ---
    z = jnp.dot(y2, m3_ref[...], preferred_element_type=f32) + b3_ref[...]   # (M, W1*D)

    # ---- InstanceNorm2d (per instance, per channel d, over K x W1) ---------
    # a_ref: block-diag ones -> per-instance row sums broadcast back to rows.
    # p_ref: delta(d,d')     -> per-channel sums over w broadcast to (w,d) lanes.
    s1 = jnp.dot(a_ref[...], z, preferred_element_type=f32)
    mean = jnp.dot(s1, p_ref[...], preferred_element_type=f32) * n_inv
    zc = z - mean
    s2 = jnp.dot(a_ref[...], zc * zc, preferred_element_type=f32)
    var = jnp.dot(s2, p_ref[...], preferred_element_type=f32) * n_inv
    zn = zc * jax.lax.rsqrt(var + eps)

    # ---- permute(0,2,1,3)+flatten folded into wl_pad; lane-dense store -----
    o_ref[...] = jnp.dot(zn, wl_ref[...], preferred_element_type=f32) + bl_ref[...]


def _const_spec(arr):
    nd = arr.ndim
    return pl.BlockSpec(arr.shape, lambda g, _nd=nd: (0,) * _nd)


def _pick_nb(B, K):
    """Instances per grid step: fill MXU rows (~128) but keep >= 2 grid steps."""
    cap = min(max(1, 128 // max(K, 1)), B)
    if B >= 2:
        cap = min(cap, (B + 1) // 2)           # >= 2 steps for v7x's 2 TCs
    divs = [d for d in range(1, cap + 1) if B % d == 0]
    aligned = [d for d in divs if (d * K) % 8 == 0]
    return max(aligned) if aligned else max(divs)


def feature_map_extractor_forward(x, params):
    """x: (#batch, #keypoints, #frames, 3)  ->  (#batch, #keypoints, out_dim)."""
    B, K, F, C = x.shape
    assert C == 3
    W1 = (F - 1) // 2 + 1
    assert W1 == params['W1']
    L, L3, LPAD = params['L'], params['L3'], params['LPAD']
    out_dim = params['out_dim']

    nb = _pick_nb(B, K)
    G = B // nb
    M = nb * K

    # H-only im2col (a few KB, built once); W-taps/stride/pad live in w1cat.
    xp = jnp.pad(x, ((0, 0), (2, 2), (0, 0), (0, 0)))              # (B, K+4, F, 3)
    xim = jnp.stack([xp[:, i:i + K] for i in range(5)], axis=2)    # (B, K, 5, F, 3)
    xim = xim.reshape(B * K, 5 * F * 3)

    # Block-diagonal per-instance row-sum matrix for InstanceNorm statistics.
    A = jnp.asarray(np.kron(np.eye(nb, dtype=np.float32),
                            np.ones((K, K), np.float32)))          # (M, M)

    weights = (params['w1cat'], params['b1_il'], params['w2cat'], params['b2_il'],
               params['m3b'], params['b3_il'], A, params['P'],
               params['wl_pad'], params['bl_pad'])

    kern = functools.partial(_fused_forward_kernel, nb=nb, K=K, L=L,
                             eps=1e-5, n_inv=1.0 / float(K * W1))

    flops = 2 * B * K * ((5 * F * 3) * L + (3 * L) * L + L * L3 + L3 * LPAD
                         + 2 * (M * L3 + L3 * L3))
    bytes_accessed = 4 * (B * K * 5 * F * 3
                          + G * sum(int(w.size) for w in weights)
                          + B * K * LPAD)

    out_flat = pl.pallas_call(
        kern,
        out_shape=jax.ShapeDtypeStruct((B * K, LPAD), jnp.float32),
        grid=(G,),
        in_specs=[pl.BlockSpec((M, 5 * F * 3), lambda g: (g, 0))]
                 + [_const_spec(w) for w in weights],
        out_specs=pl.BlockSpec((M, LPAD), lambda g: (g, 0)),
        compiler_params=pltpu.CompilerParams(
            dimension_semantics=("parallel",)),
        cost_estimate=pl.CostEstimate(flops=int(flops),
                                      transcendentals=int(B * K * L3),
                                      bytes_accessed=int(bytes_accessed)),
    )(xim, *weights)

    return out_flat[:, :out_dim].reshape(B, K, out_dim)


# ------------------------ parameter / weight packing ------------------------

def init_params(key, num_keypoints, frames, out_dim):
    K, F = num_keypoints, frames
    W1 = (F - 1) // 2 + 1
    D = (32 - 5) // 3 + 1                       # Conv3d depth outputs = 10
    L = W1 * 32
    L3 = W1 * D
    num_f = num_keypoints * 5
    assert D * W1 == num_f, "module requires 10*ceil(frames/2) == num_keypoints*5"
    LPAD = 128 * ((out_dim + 127) // 128)       # lane-dense output padding

    ks = jax.random.split(key, 8)
    w1 = jax.random.normal(ks[0], (5, 5, 3, 32), jnp.float32) * 0.1   # HWIO
    b1 = jax.random.normal(ks[1], (32,), jnp.float32) * 0.01
    w2 = jax.random.normal(ks[2], (3, 3, 32, 32), jnp.float32) * 0.1  # HWIO
    b2 = jax.random.normal(ks[3], (32,), jnp.float32) * 0.01
    w3 = jax.random.normal(ks[4], (5,), jnp.float32) * 0.1            # Conv3d taps
    b3 = jax.random.normal(ks[5], (), jnp.float32) * 0.01
    wl = jax.random.normal(ks[6], (num_f, out_dim), jnp.float32) * 0.1
    bl = jax.random.normal(ks[7], (out_dim,), jnp.float32) * 0.01

    w1_np, w2_np = np.asarray(w1), np.asarray(w2)
    w3_np, wl_np, bl_np = np.asarray(w3), np.asarray(wl), np.asarray(bl)

    # conv1: 5 H-taps stacked row-major -> single (5*F*3, W1*32) operand; folds
    # the 5 W-taps, stride 2 and width padding (out-of-range taps dropped).
    w1cat = np.zeros((5, F * 3, L), np.float32)
    for i in range(5):
        for w in range(W1):
            for j in range(5):
                f = 2 * w + j - 2
                if 0 <= f < F:
                    w1cat[i, f * 3:(f + 1) * 3, w * 32:(w + 1) * 32] = w1_np[i, j]
    w1cat = w1cat.reshape(5 * F * 3, L)
    b1_il = np.tile(np.asarray(b1), W1).reshape(1, L)

    # conv2: 3 H-taps (lane-stacked) x banded W-taps -> single (3*L, L) operand.
    w2cat = np.zeros((3, L, L), np.float32)
    for i in range(3):
        for w in range(W1):
            for j in range(3):
                wq = w + j - 1
                if 0 <= wq < W1:
                    w2cat[i, wq * 32:(wq + 1) * 32, w * 32:(w + 1) * 32] = w2_np[i, j]
    w2cat = w2cat.reshape(3 * L, L)
    b2_il = np.tile(np.asarray(b2), W1).reshape(1, L)

    # conv3d over the 32-channel axis, stride 3 -> D outputs, as a
    # block-diagonal (W1*32 -> W1*D) channel-mixing matrix.
    m3 = np.zeros((32, D), np.float32)
    for d in range(D):
        m3[3 * d:3 * d + 5, d] = w3_np
    m3b = np.zeros((L, L3), np.float32)
    for w in range(W1):
        m3b[w * 32:(w + 1) * 32, w * D:(w + 1) * D] = m3
    b3_il = np.full((1, L3), float(b3), np.float32)

    # InstanceNorm broadcast matrix P[w*D+d, w'*D+d'] = delta(d, d')  (= sel @ selT).
    P = np.tile(np.eye(D, dtype=np.float32), (W1, W1))             # (L3, L3)

    # Final linear with the post-instnorm permute(0,2,1,3)+flatten folded into
    # the rows (kernel column w*D+d <- torch feature d*W1+w), padded to LPAD
    # lanes so the output store is unmasked.
    wl_perm = wl_np.reshape(D, W1, out_dim).transpose(1, 0, 2).reshape(L3, out_dim)
    wl_pad = np.zeros((L3, LPAD), np.float32)
    wl_pad[:, :out_dim] = wl_perm
    bl_pad = np.zeros((1, LPAD), np.float32)
    bl_pad[0, :out_dim] = bl_np

    return dict(
        D=D, W1=W1, L=L, L3=L3, LPAD=LPAD, out_dim=out_dim,
        w1cat=jnp.asarray(w1cat), b1_il=jnp.asarray(b1_il),
        w2cat=jnp.asarray(w2cat), b2_il=jnp.asarray(b2_il),
        m3b=jnp.asarray(m3b), b3_il=jnp.asarray(b3_il),
        P=jnp.asarray(P),
        wl_pad=jnp.asarray(wl_pad), bl_pad=jnp.asarray(bl_pad),
        # originals for the pure-JAX reference
        w1_hwio=w1, b1=b1, w2_hwio=w2, b2=b2, w3=w3, b3_scalar=b3,
        wl=wl, bl=bl,
    )


# --------------------------- pure-JAX reference -----------------------------

def ref_forward(x, params):
    y = jax.lax.conv_general_dilated(
        x, params['w1_hwio'], window_strides=(1, 2), padding=((2, 2), (2, 2)),
        dimension_numbers=('NHWC', 'HWIO', 'NHWC')) + params['b1']
    y = jnp.maximum(y, 0.0)
    y = jax.lax.conv_general_dilated(
        y, params['w2_hwio'], window_strides=(1, 1), padding=((1, 1), (1, 1)),
        dimension_numbers=('NHWC', 'HWIO', 'NHWC')) + params['b2']
    y = jnp.maximum(y, 0.0)
    B, H, W, _ = y.shape
    D = params['D']
    z = jnp.stack(
        [jnp.tensordot(y[..., 3 * d:3 * d + 5], params['w3'], axes=([-1], [0]))
         for d in range(D)], axis=-1) + params['b3_scalar']
    mean = z.mean(axis=(1, 2), keepdims=True)
    var = ((z - mean) ** 2).mean(axis=(1, 2), keepdims=True)
    z = (z - mean) / jnp.sqrt(var + 1e-5)
    z = jnp.transpose(z, (0, 1, 3, 2)).reshape(B, H, D * W)
    return z @ params['wl'] + params['bl']


# ---------------------------------- main ------------------------------------

if __name__ == "__main__":
    num_keypoints, out_dim = 8, 16
    batch, frames = 4, 8   # module requires 10 * ceil(frames/2) == num_keypoints * 5

    key = jax.random.PRNGKey(0)
    kx, kp = jax.random.split(key)
    x = jax.random.normal(kx, (batch, num_keypoints, frames, 3), jnp.float32)
    params = init_params(kp, num_keypoints, frames, out_dim)

    fwd = jax.jit(lambda inp: feature_map_extractor_forward(inp, params))
    out = jax.block_until_ready(fwd(x))

    ref = jax.block_until_ready(ref_forward(x, params))
    assert out.shape == (batch, num_keypoints, out_dim), out.shape
    max_err = float(np.max(np.abs(np.asarray(out) - np.asarray(ref))))
    assert np.allclose(np.asarray(out), np.asarray(ref), atol=1e-3, rtol=1e-3), max_err

    print("KERNEL_OK")
</pallas_src>

<mosaic_0001>
module attributes {stable_mosaic.version = 11 : i64} {
  func.func @_fused_forward_kernel(%arg0: i32, %arg1: memref<16x120xf32, #tpu.memory_space<vmem>>, %arg2: memref<120x128xf32, #tpu.memory_space<vmem>>, %arg3: memref<1x128xf32, #tpu.memory_space<vmem>>, %arg4: memref<384x128xf32, #tpu.memory_space<vmem>>, %arg5: memref<1x128xf32, #tpu.memory_space<vmem>>, %arg6: memref<128x40xf32, #tpu.memory_space<vmem>>, %arg7: memref<1x40xf32, #tpu.memory_space<vmem>>, %arg8: memref<16x16xf32, #tpu.memory_space<vmem>>, %arg9: memref<40x40xf32, #tpu.memory_space<vmem>>, %arg10: memref<40x128xf32, #tpu.memory_space<vmem>>, %arg11: memref<1x128xf32, #tpu.memory_space<vmem>>, %arg12: memref<16x128xf32, #tpu.memory_space<vmem>>) attributes {dimension_semantics = [#tpu.dimension_semantics<parallel>], iteration_bounds = array<i64: 2>, scalar_prefetch = 0 : i64, scratch_operands = 0 : i64, tpu.core_type = #tpu.core_type<tc>, window_params = [{transform_indices = @transform_0, window_bounds = array<i64: 16, 120>}, {pipeline_mode = #tpu.pipeline_mode<synchronous>, transform_indices = @transform_1, window_bounds = array<i64: 120, 128>}, {pipeline_mode = #tpu.pipeline_mode<synchronous>, transform_indices = @transform_2, window_bounds = array<i64: 1, 128>}, {pipeline_mode = #tpu.pipeline_mode<synchronous>, transform_indices = @transform_3, window_bounds = array<i64: 384, 128>}, {pipeline_mode = #tpu.pipeline_mode<synchronous>, transform_indices = @transform_4, window_bounds = array<i64: 1, 128>}, {pipeline_mode = #tpu.pipeline_mode<synchronous>, transform_indices = @transform_5, window_bounds = array<i64: 128, 40>}, {pipeline_mode = #tpu.pipeline_mode<synchronous>, transform_indices = @transform_6, window_bounds = array<i64: 1, 40>}, {pipeline_mode = #tpu.pipeline_mode<synchronous>, transform_indices = @transform_7, window_bounds = array<i64: 16, 16>}, {pipeline_mode = #tpu.pipeline_mode<synchronous>, transform_indices = @transform_8, window_bounds = array<i64: 40, 40>}, {pipeline_mode = #tpu.pipeline_mode<synchronous>, transform_indices = @transform_9, window_bounds = array<i64: 40, 128>}, {pipeline_mode = #tpu.pipeline_mode<synchronous>, transform_indices = @transform_10, window_bounds = array<i64: 1, 128>}, {transform_indices = @transform_11, window_bounds = array<i64: 16, 128>}]} {
    %c0 = arith.constant 0 : index
    %c0_0 = arith.constant 0 : index
    %0 = vector.load %arg1[%c0, %c0_0] : memref<16x120xf32, #tpu.memory_space<vmem>>, vector<16x120xf32>
    %c0_1 = arith.constant 0 : index
    %c0_2 = arith.constant 0 : index
    %1 = vector.load %arg2[%c0_1, %c0_2] : memref<120x128xf32, #tpu.memory_space<vmem>>, vector<120x128xf32>
    %cst = arith.constant dense<0.000000e+00> : vector<16x128xf32>
    %2 = tpu.matmul %0, %1, %cst {dimension_numbers = #tpu.dot_dimension_numbers<[1], [0], [0], [1], [0, 0, 1, 1], [], []>} : vector<16x120xf32>, vector<120x128xf32>, vector<16x128xf32> -> vector<16x128xf32>
    %c0_3 = arith.constant 0 : index
    %c0_4 = arith.constant 0 : index
    %3 = vector.load %arg3[%c0_3, %c0_4] : memref<1x128xf32, #tpu.memory_space<vmem>>, vector<1x128xf32>
    %4 = vector.broadcast %3 : vector<1x128xf32> to vector<16x128xf32>
    %5 = arith.addf %2, %4 : vector<16x128xf32>
    %cst_5 = arith.constant 0.000000e+00 : f32
    %6 = vector.broadcast %cst_5 : f32 to vector<16x128xf32>
    %7 = arith.maximumf %5, %6 : vector<16x128xf32>
    %cst_6 = arith.constant 0.000000e+00 : f32
    %8 = vector.broadcast %cst_6 : f32 to vector<1x128xf32>
    %9 = vector.extract_strided_slice %7 {offsets = [0, 0], sizes = [8, 128], strides = [1, 1]} : vector<16x128xf32> to vector<8x128xf32>
    %10 = vector.extract_strided_slice %9 {offsets = [0, 0], sizes = [7, 128], strides = [1, 1]} : vector<8x128xf32> to vector<7x128xf32>
    %11 = vector.extract_strided_slice %9 {offsets = [1, 0], sizes = [7, 128], strides = [1, 1]} : vector<8x128xf32> to vector<7x128xf32>
    %12 = vector.extract_strided_slice %7 {offsets = [8, 0], sizes = [8, 128], strides = [1, 1]} : vector<16x128xf32> to vector<8x128xf32>
    %13 = vector.extract_strided_slice %12 {offsets = [0, 0], sizes = [7, 128], strides = [1, 1]} : vector<8x128xf32> to vector<7x128xf32>
    %14 = vector.extract_strided_slice %12 {offsets = [1, 0], sizes = [7, 128], strides = [1, 1]} : vector<8x128xf32> to vector<7x128xf32>
    %15 = tpu.concatenate %8, %10, %8, %13 in 0 : vector<1x128xf32>, vector<7x128xf32>, vector<1x128xf32>, vector<7x128xf32> -> vector<16x128xf32>
    %16 = tpu.concatenate %11, %8, %14, %8 in 0 : vector<7x128xf32>, vector<1x128xf32>, vector<7x128xf32>, vector<1x128xf32> -> vector<16x128xf32>
    %17 = tpu.concatenate %15, %7, %16 in 1 : vector<16x128xf32>, vector<16x128xf32>, vector<16x128xf32> -> vector<16x384xf32>
    %c0_7 = arith.constant 0 : index
    %c0_8 = arith.constant 0 : index
    %18 = vector.load %arg4[%c0_7, %c0_8] : memref<384x128xf32, #tpu.memory_space<vmem>>, vector<384x128xf32>
    %cst_9 = arith.constant dense<0.000000e+00> : vector<16x128xf32>
    %19 = tpu.matmul %17, %18, %cst_9 {dimension_numbers = #tpu.dot_dimension_numbers<[1], [0], [0], [1], [0, 0, 1, 1], [], []>} : vector<16x384xf32>, vector<384x128xf32>, vector<16x128xf32> -> vector<16x128xf32>
    %c0_10 = arith.constant 0 : index
    %c0_11 = arith.constant 0 : index
    %20 = vector.load %arg5[%c0_10, %c0_11] : memref<1x128xf32, #tpu.memory_space<vmem>>, vector<1x128xf32>
    %21 = vector.broadcast %20 : vector<1x128xf32> to vector<16x128xf32>
    %22 = arith.addf %19, %21 : vector<16x128xf32>
    %cst_12 = arith.constant 0.000000e+00 : f32
    %23 = vector.broadcast %cst_12 : f32 to vector<16x128xf32>
    %24 = arith.maximumf %22, %23 : vector<16x128xf32>
    %c0_13 = arith.constant 0 : index
    %c0_14 = arith.constant 0 : index
    %25 = vector.load %arg6[%c0_13, %c0_14] : memref<128x40xf32, #tpu.memory_space<vmem>>, vector<128x40xf32>
    %cst_15 = arith.constant dense<0.000000e+00> : vector<16x40xf32>
    %26 = tpu.matmul %24, %25, %cst_15 {dimension_numbers = #tpu.dot_dimension_numbers<[1], [0], [0], [1], [0, 0, 1, 1], [], []>} : vector<16x128xf32>, vector<128x40xf32>, vector<16x40xf32> -> vector<16x40xf32>
    %c0_16 = arith.constant 0 : index
    %c0_17 = arith.constant 0 : index
    %27 = vector.load %arg7[%c0_16, %c0_17] : memref<1x40xf32, #tpu.memory_space<vmem>>, vector<1x40xf32>
    %28 = vector.broadcast %27 : vector<1x40xf32> to vector<16x40xf32>
    %29 = arith.addf %26, %28 : vector<16x40xf32>
    %c0_18 = arith.constant 0 : index
    %c0_19 = arith.constant 0 : index
    %30 = vector.load %arg8[%c0_18, %c0_19] : memref<16x16xf32, #tpu.memory_space<vmem>>, vector<16x16xf32>
    %cst_20 = arith.constant dense<0.000000e+00> : vector<16x40xf32>
    %31 = tpu.matmul %30, %29, %cst_20 {dimension_numbers = #tpu.dot_dimension_numbers<[1], [0], [0], [1], [0, 0, 1, 1], [], []>} : vector<16x16xf32>, vector<16x40xf32>, vector<16x40xf32> -> vector<16x40xf32>
    %c0_21 = arith.constant 0 : index
    %c0_22 = arith.constant 0 : index
    %32 = vector.load %arg9[%c0_21, %c0_22] : memref<40x40xf32, #tpu.memory_space<vmem>>, vector<40x40xf32>
    %cst_23 = arith.constant dense<0.000000e+00> : vector<16x40xf32>
    %33 = tpu.matmul %31, %32, %cst_23 {dimension_numbers = #tpu.dot_dimension_numbers<[1], [0], [0], [1], [0, 0, 1, 1], [], []>} : vector<16x40xf32>, vector<40x40xf32>, vector<16x40xf32> -> vector<16x40xf32>
    %cst_24 = arith.constant 3.125000e-02 : f32
    %34 = vector.broadcast %cst_24 : f32 to vector<16x40xf32>
    %35 = arith.mulf %33, %34 : vector<16x40xf32>
    %36 = arith.subf %29, %35 : vector<16x40xf32>
    %c0_25 = arith.constant 0 : index
    %c0_26 = arith.constant 0 : index
    %37 = vector.load %arg8[%c0_25, %c0_26] : memref<16x16xf32, #tpu.memory_space<vmem>>, vector<16x16xf32>
    %38 = arith.mulf %36, %36 : vector<16x40xf32>
    %cst_27 = arith.constant dense<0.000000e+00> : vector<16x40xf32>
    %39 = tpu.matmul %37, %38, %cst_27 {dimension_numbers = #tpu.dot_dimension_numbers<[1], [0], [0], [1], [0, 0, 1, 1], [], []>} : vector<16x16xf32>, vector<16x40xf32>, vector<16x40xf32> -> vector<16x40xf32>
    %c0_28 = arith.constant 0 : index
    %c0_29 = arith.constant 0 : index
    %40 = vector.load %arg9[%c0_28, %c0_29] : memref<40x40xf32, #tpu.memory_space<vmem>>, vector<40x40xf32>
    %cst_30 = arith.constant dense<0.000000e+00> : vector<16x40xf32>
    %41 = tpu.matmul %39, %40, %cst_30 {dimension_numbers = #tpu.dot_dimension_numbers<[1], [0], [0], [1], [0, 0, 1, 1], [], []>} : vector<16x40xf32>, vector<40x40xf32>, vector<16x40xf32> -> vector<16x40xf32>
    %cst_31 = arith.constant 3.125000e-02 : f32
    %42 = vector.broadcast %cst_31 : f32 to vector<16x40xf32>
    %43 = arith.mulf %41, %42 : vector<16x40xf32>
    %cst_32 = arith.constant 9.99999974E-6 : f32
    %44 = vector.broadcast %cst_32 : f32 to vector<16x40xf32>
    %45 = arith.addf %43, %44 : vector<16x40xf32>
    %46 = math.rsqrt %45 : vector<16x40xf32>
    %47 = arith.mulf %36, %46 : vector<16x40xf32>
    %c0_33 = arith.constant 0 : index
    %c0_34 = arith.constant 0 : index
    %48 = vector.load %arg10[%c0_33, %c0_34] : memref<40x128xf32, #tpu.memory_space<vmem>>, vector<40x128xf32>
    %cst_35 = arith.constant dense<0.000000e+00> : vector<16x128xf32>
    %49 = tpu.matmul %47, %48, %cst_35 {dimension_numbers = #tpu.dot_dimension_numbers<[1], [0], [0], [1], [0, 0, 1, 1], [], []>} : vector<16x40xf32>, vector<40x128xf32>, vector<16x128xf32> -> vector<16x128xf32>
    %c0_36 = arith.constant 0 : index
    %c0_37 = arith.constant 0 : index
    %50 = vector.load %arg11[%c0_36, %c0_37] : memref<1x128xf32, #tpu.memory_space<vmem>>, vector<1x128xf32>
    %51 = vector.broadcast %50 : vector<1x128xf32> to vector<16x128xf32>
    %52 = arith.addf %49, %51 : vector<16x128xf32>
    %c0_38 = arith.constant 0 : index
    %c0_39 = arith.constant 0 : index
    %53 = vector.load %arg12[%c0_38, %c0_39] : memref<16x128xf32, #tpu.memory_space<vmem>>, vector<16x128xf32>
    tpu.vector_store %arg12[%c0_38, %c0_39], %52 {strides = array<i32>} : memref<16x128xf32, #tpu.memory_space<vmem>>, vector<16x128xf32>,
    return
  }
  func.func @transform_0(%arg0: i32) -> (i32, i32) {
    %c0_i32 = arith.constant 0 : i32
    %c0_i32_0 = arith.constant 0 : i32
    return %arg0, %c0_i32 : i32, i32
  }
  func.func @transform_1(%arg0: i32) -> (i32, i32) {
    %c0_i32 = arith.constant 0 : i32
    %c0_i32_0 = arith.constant 0 : i32
    %c0_i32_1 = arith.constant 0 : i32
    return %c0_i32, %c0_i32_0 : i32, i32
  }
  func.func @transform_2(%arg0: i32) -> (i32, i32) {
    %c0_i32 = arith.constant 0 : i32
    %c0_i32_0 = arith.constant 0 : i32
    %c0_i32_1 = arith.constant 0 : i32
    return %c0_i32, %c0_i32_0 : i32, i32
  }
  func.func @transform_3(%arg0: i32) -> (i32, i32) {
    %c0_i32 = arith.constant 0 : i32
    %c0_i32_0 = arith.constant 0 : i32
    %c0_i32_1 = arith.constant 0 : i32
    return %c0_i32, %c0_i32_0 : i32, i32
  }
  func.func @transform_4(%arg0: i32) -> (i32, i32) {
    %c0_i32 = arith.constant 0 : i32
    %c0_i32_0 = arith.constant 0 : i32
    %c0_i32_1 = arith.constant 0 : i32
    return %c0_i32, %c0_i32_0 : i32, i32
  }
  func.func @transform_5(%arg0: i32) -> (i32, i32) {
    %c0_i32 = arith.constant 0 : i32
    %c0_i32_0 = arith.constant 0 : i32
    %c0_i32_1 = arith.constant 0 : i32
    return %c0_i32, %c0_i32_0 : i32, i32
  }
  func.func @transform_6(%arg0: i32) -> (i32, i32) {
    %c0_i32 = arith.constant 0 : i32
    %c0_i32_0 = arith.constant 0 : i32
    %c0_i32_1 = arith.constant 0 : i32
    return %c0_i32, %c0_i32_0 : i32, i32
  }
  func.func @transform_7(%arg0: i32) -> (i32, i32) {
    %c0_i32 = arith.constant 0 : i32
    %c0_i32_0 = arith.constant 0 : i32
    %c0_i32_1 = arith.constant 0 : i32
    return %c0_i32, %c0_i32_0 : i32, i32
  }
  func.func @transform_8(%arg0: i32) -> (i32, i32) {
    %c0_i32 = arith.constant 0 : i32
    %c0_i32_0 = arith.constant 0 : i32
    %c0_i32_1 = arith.constant 0 : i32
    return %c0_i32, %c0_i32_0 : i32, i32
  }
  func.func @transform_9(%arg0: i32) -> (i32, i32) {
    %c0_i32 = arith.constant 0 : i32
    %c0_i32_0 = arith.constant 0 : i32
    %c0_i32_1 = arith.constant 0 : i32
    return %c0_i32, %c0_i32_0 : i32, i32
  }
  func.func @transform_10(%arg0: i32) -> (i32, i32) {
    %c0_i32 = arith.constant 0 : i32
    %c0_i32_0 = arith.constant 0 : i32
    %c0_i32_1 = arith.constant 0 : i32
    return %c0_i32, %c0_i32_0 : i32, i32
  }
  func.func @transform_11(%arg0: i32) -> (i32, i32) {
    %c0_i32 = arith.constant 0 : i32
    %c0_i32_0 = arith.constant 0 : i32
    return %arg0, %c0_i32 : i32, i32
  }
}

</mosaic_0001>

<llo_original>
// kernel: _lambda_.1
$region0: #{_lambda_.1}
  #allocation0 [shape = 'u32[]', space=smem, size = 0x4, offset = 0x4, fixed_abs, tag = 'smem constant byte address 0x4 - core index']
  #allocation1 [shape = 'u32[144,128]{1,0:T(1,128)}', space=vmem, size = 0x12000, scoped, tag = 'internal scratch']
  %s0 = inlined_call_operand.vmem [shape: f32[32,120], index: 0, kind: input, shape index: {}]
  %s1 = inlined_call_operand.vmem [shape: f32[120,128], index: 1, kind: input, shape index: {}]
  %s2 = inlined_call_operand.vmem [shape: f32[1,128], index: 2, kind: input, shape index: {}]
  %s3 = inlined_call_operand.vmem [shape: f32[384,128], index: 3, kind: input, shape index: {}]
  %s4 = inlined_call_operand.vmem [shape: f32[1,128], index: 4, kind: input, shape index: {}]
  %s5 = inlined_call_operand.vmem [shape: f32[128,40], index: 5, kind: input, shape index: {}]
  %s6 = inlined_call_operand.vmem [shape: f32[1,40], index: 6, kind: input, shape index: {}]
  %s7 = inlined_call_operand.vmem [shape: f32[16,16], index: 7, kind: input, shape index: {}]
  %s8 = inlined_call_operand.vmem [shape: f32[40,40], index: 8, kind: input, shape index: {}]
  %s9 = inlined_call_operand.vmem [shape: f32[40,128], index: 9, kind: input, shape index: {}]
  %s10 = inlined_call_operand.vmem [shape: f32[1,128], index: 10, kind: input, shape index: {}]
  %s11 = inlined_call_operand.vmem [shape: f32[32,128], index: 11, kind: output, shape index: {}]
  %s12 = sld [smem:[#allocation0]]
  $region77: #{_lambda_.1} parent=0
    _
  %s14 = ssub.s32 1, %s12
  %s15 = scalar_select 0, %s14, %s12
  loop: start=0, step=1, limit=4
  $region2: #{_lambda_.1} parent=0 // loop_pre_header
    _
  $region3: #{_lambda_.1} parent=0 // loop_header
    %s17 = sphi 0, %s21
    %p18 = scmp.ge.s32.totalorder %s17, 4
    %s27 = sphi 0, %s29
    %s30 = sphi 0, %s27
    %s31 = sphi 0, %s30
    %s47 = sphi 0, %s31
    %s51 = sphi 0, %s51
    %s53 = sphi 0, %s51
    %s54 = sphi 0, %s53
    %s68 = sphi 0, %s54
    %s72 = sphi 0, %s72
    %s74 = sphi 0, %s72
    %s75 = sphi 0, %s74
    %s89 = sphi 0, %s75
    %s93 = sphi 0, %s93
    %s95 = sphi 0, %s93
    %s96 = sphi 0, %s95
    %s110 = sphi 0, %s96
    %s114 = sphi 0, %s114
    %s116 = sphi 0, %s114
    %s117 = sphi 0, %s116
    %s131 = sphi 0, %s117
    %s135 = sphi 0, %s135
    %s137 = sphi 0, %s135
    %s138 = sphi 0, %s137
    %s152 = sphi 0, %s138
    %s156 = sphi 0, %s156
    %s158 = sphi 0, %s156
    %s159 = sphi 0, %s158
    %s173 = sphi 0, %s159
    %s177 = sphi 0, %s177
    %s179 = sphi 0, %s177
    %s180 = sphi 0, %s179
    %s194 = sphi 0, %s180
    %s198 = sphi 0, %s198
    %s200 = sphi 0, %s198
    %s201 = sphi 0, %s200
    %s215 = sphi 0, %s201
    %s219 = sphi 0, %s219
    %s221 = sphi 0, %s219
    %s222 = sphi 0, %s221
    %s236 = sphi 0, %s222
    %s240 = sphi 0, %s240
    %s242 = sphi 0, %s240
    %s243 = sphi 0, %s242
    %s257 = sphi 0, %s243
    %s263 = sphi 0, %s265
    %s266 = sphi 0, %s263
    %s267 = sphi 0, %s266
    %s283 = sphi 0, %s267
  $region4: #{_lambda_.1} parent=0 // loop_header_branch
    %20 = sbr.rel (%p18) target = $region8
  $region5: #{_lambda_.1} parent=0 // loop_body
    %s22 = ssub.s32 %s17, 1
    %s23 = ssub.s32 %s17, 2
    %s24 = sadd.s32 %s17, 1
    %s25 = ssub.s32 %s17, %s24
    %p26 = scmp.eq.s32.totalorder %s25, 0
    %s28 = sadd.s32 %s27, 1
    %s29 = scalar_select %p26, %s27, %s28
    %p32 = pneg %p26
    %p33 = scmp.eq.s32.totalorder %s17, 1
    %p34 = por %p32, %p33
    %p35 = scmp.ne.s32.totalorder %s27, %s30
    %p36 = scmp.eq.s32.totalorder %s17, 0
    %p37 = por %p35, %p36
    %p38 = scmp.ne.s32.totalorder %s27, %s30
    %p39 = scmp.eq.s32.totalorder %s22, 1
    %p40 = por %p38, %p39
    %p41 = scmp.ne.s32.totalorder %s30, %s31
    %p42 = scmp.eq.s32.totalorder %s22, 0
    %p43 = por %p41, %p42
    %p44 = scmp.ne.s32.totalorder %s30, %s31
    %p45 = scmp.eq.s32.totalorder %s23, 1
    %p46 = por %p44, %p45
    %p48 = scmp.ne.s32.totalorder %s31, %s47
    %p49 = scmp.eq.s32.totalorder %s23, 0
    %p50 = por %p48, %p49
    %s52 = sadd.s32 %s51, 1
    %p55 = scmp.eq.s32.totalorder %s17, 1
    %p56 = scmp.ne.s32.totalorder %s51, %s53
    %p57 = scmp.eq.s32.totalorder %s17, 0
    %p58 = por %p56, %p57
    %p59 = scmp.ne.s32.totalorder %s51, %s53
    %p60 = scmp.eq.s32.totalorder %s22, 1
    %p61 = por %p59, %p60
    %p62 = scmp.ne.s32.totalorder %s53, %s54
    %p63 = scmp.eq.s32.totalorder %s22, 0
    %p64 = por %p62, %p63
    %p65 = scmp.ne.s32.totalorder %s53, %s54
    %p66 = scmp.eq.s32.totalorder %s23, 1
    %p67 = por %p65, %p66
    %p69 = scmp.ne.s32.totalorder %s54, %s68
    %p70 = scmp.eq.s32.totalorder %s23, 0
    %p71 = por %p69, %p70
    %s73 = sadd.s32 %s72, 1
    %p76 = scmp.eq.s32.totalorder %s17, 1
    %p77 = scmp.ne.s32.totalorder %s72, %s74
    %p78 = scmp.eq.s32.totalorder %s17, 0
    %p79 = por %p77, %p78
    %p80 = scmp.ne.s32.totalorder %s72, %s74
    %p81 = scmp.eq.s32.totalorder %s22, 1
    %p82 = por %p80, %p81
    %p83 = scmp.ne.s32.totalorder %s74, %s75
    %p84 = scmp.eq.s32.totalorder %s22, 0
    %p85 = por %p83, %p84
    %p86 = scmp.ne.s32.totalorder %s74, %s75
    %p87 = scmp.eq.s32.totalorder %s23, 1
    %p88 = por %p86, %p87
    %p90 = scmp.ne.s32.totalorder %s75, %s89
    %p91 = scmp.eq.s32.totalorder %s23, 0
    %p92 = por %p90, %p91
    %s94 = sadd.s32 %s93, 1
    %p97 = scmp.eq.s32.totalorder %s17, 1
    %p98 = scmp.ne.s32.totalorder %s93, %s95
    %p99 = scmp.eq.s32.totalorder %s17, 0
    %p100 = por %p98, %p99
    %p101 = scmp.ne.s32.totalorder %s93, %s95
    %p102 = scmp.eq.s32.totalorder %s22, 1
    %p103 = por %p101, %p102
    %p104 = scmp.ne.s32.totalorder %s95, %s96
    %p105 = scmp.eq.s32.totalorder %s22, 0
    %p106 = por %p104, %p105
    %p107 = scmp.ne.s32.totalorder %s95, %s96
    %p108 = scmp.eq.s32.totalorder %s23, 1
    %p109 = por %p107, %p108
    %p111 = scmp.ne.s32.totalorder %s96, %s110
    %p112 = scmp.eq.s32.totalorder %s23, 0
    %p113 = por %p111, %p112
    %s115 = sadd.s32 %s114, 1
    %p118 = scmp.eq.s32.totalorder %s17, 1
    %p119 = scmp.ne.s32.totalorder %s114, %s116
    %p120 = scmp.eq.s32.totalorder %s17, 0
    %p121 = por %p119, %p120
    %p122 = scmp.ne.s32.totalorder %s114, %s116
    %p123 = scmp.eq.s32.totalorder %s22, 1
    %p124 = por %p122, %p123
    %p125 = scmp.ne.s32.totalorder %s116, %s117
    %p126 = scmp.eq.s32.totalorder %s22, 0
    %p127 = por %p125, %p126
    %p128 = scmp.ne.s32.totalorder %s116, %s117
    %p129 = scmp.eq.s32.totalorder %s23, 1
    %p130 = por %p128, %p129
    %p132 = scmp.ne.s32.totalorder %s117, %s131
    %p133 = scmp.eq.s32.totalorder %s23, 0
    %p134 = por %p132, %p133
    %s136 = sadd.s32 %s135, 1
    %p139 = scmp.eq.s32.totalorder %s17, 1
    %p140 = scmp.ne.s32.totalorder %s135, %s137
    %p141 = scmp.eq.s32.totalorder %s17, 0
    %p142 = por %p140, %p141
    %p143 = scmp.ne.s32.totalorder %s135, %s137
    %p144 = scmp.eq.s32.totalorder %s22, 1
    %p145 = por %p143, %p144
    %p146 = scmp.ne.s32.totalorder %s137, %s138
    %p147 = scmp.eq.s32.totalorder %s22, 0
    %p148 = por %p146, %p147
    %p149 = scmp.ne.s32.totalorder %s137, %s138
    %p150 = scmp.eq.s32.totalorder %s23, 1
    %p151 = por %p149, %p150
    %p153 = scmp.ne.s32.totalorder %s138, %s152
    %p154 = scmp.eq.s32.totalorder %s23, 0
    %p155 = por %p153, %p154
    %s157 = sadd.s32 %s156, 1
    %p160 = scmp.eq.s32.totalorder %s17, 1
    %p161 = scmp.ne.s32.totalorder %s156, %s158
    %p162 = scmp.eq.s32.totalorder %s17, 0
    %p163 = por %p161, %p162
    %p164 = scmp.ne.s32.totalorder %s156, %s158
    %p165 = scmp.eq.s32.totalorder %s22, 1
    %p166 = por %p164, %p165
    %p167 = scmp.ne.s32.totalorder %s158, %s159
    %p168 = scmp.eq.s32.totalorder %s22, 0
    %p169 = por %p167, %p168
    %p170 = scmp.ne.s32.totalorder %s158, %s159
    %p171 = scmp.eq.s32.totalorder %s23, 1
    %p172 = por %p170, %p171
    %p174 = scmp.ne.s32.totalorder %s159, %s173
    %p175 = scmp.eq.s32.totalorder %s23, 0
    %p176 = por %p174, %p175
    %s178 = sadd.s32 %s177, 1
    %p181 = scmp.eq.s32.totalorder %s17, 1
    %p182 = scmp.ne.s32.totalorder %s177, %s179
    %p183 = scmp.eq.s32.totalorder %s17, 0
    %p184 = por %p182, %p183
    %p185 = scmp.ne.s32.totalorder %s177, %s179
    %p186 = scmp.eq.s32.totalorder %s22, 1
    %p187 = por %p185, %p186
    %p188 = scmp.ne.s32.totalorder %s179, %s180
    %p189 = scmp.eq.s32.totalorder %s22, 0
    %p190 = por %p188, %p189
    %p191 = scmp.ne.s32.totalorder %s179, %s180
    %p192 = scmp.eq.s32.totalorder %s23, 1
    %p193 = por %p191, %p192
    %p195 = scmp.ne.s32.totalorder %s180, %s194
    %p196 = scmp.eq.s32.totalorder %s23, 0
    %p197 = por %p195, %p196
    %s199 = sadd.s32 %s198, 1
    %p202 = scmp.eq.s32.totalorder %s17, 1
    %p203 = scmp.ne.s32.totalorder %s198, %s200
    %p204 = scmp.eq.s32.totalorder %s17, 0
    %p205 = por %p203, %p204
    %p206 = scmp.ne.s32.totalorder %s198, %s200
    %p207 = scmp.eq.s32.totalorder %s22, 1
    %p208 = por %p206, %p207
    %p209 = scmp.ne.s32.totalorder %s200, %s201
    %p210 = scmp.eq.s32.totalorder %s22, 0
    %p211 = por %p209, %p210
    %p212 = scmp.ne.s32.totalorder %s200, %s201
    %p213 = scmp.eq.s32.totalorder %s23, 1
    %p214 = por %p212, %p213
    %p216 = scmp.ne.s32.totalorder %s201, %s215
    %p217 = scmp.eq.s32.totalorder %s23, 0
    %p218 = por %p216, %p217
    %s220 = sadd.s32 %s219, 1
    %p223 = scmp.eq.s32.totalorder %s17, 1
    %p224 = scmp.ne.s32.totalorder %s219, %s221
    %p225 = scmp.eq.s32.totalorder %s17, 0
    %p226 = por %p224, %p225
    %p227 = scmp.ne.s32.totalorder %s219, %s221
    %p228 = scmp.eq.s32.totalorder %s22, 1
    %p229 = por %p227, %p228
    %p230 = scmp.ne.s32.totalorder %s221, %s222
    %p231 = scmp.eq.s32.totalorder %s22, 0
    %p232 = por %p230, %p231
    %p233 = scmp.ne.s32.totalorder %s221, %s222
    %p234 = scmp.eq.s32.totalorder %s23, 1
    %p235 = por %p233, %p234
    %p237 = scmp.ne.s32.totalorder %s222, %s236
    %p238 = scmp.eq.s32.totalorder %s23, 0
    %p239 = por %p237, %p238
    %s241 = sadd.s32 %s240, 1
    %p244 = scmp.eq.s32.totalorder %s17, 1
    %p245 = scmp.ne.s32.totalorder %s240, %s242
    %p246 = scmp.eq.s32.totalorder %s17, 0
    %p247 = por %p245, %p246
    %p248 = scmp.ne.s32.totalorder %s240, %s242
    %p249 = scmp.eq.s32.totalorder %s22, 1
    %p250 = por %p248, %p249
    %p251 = scmp.ne.s32.totalorder %s242, %s243
    %p252 = scmp.eq.s32.totalorder %s22, 0
    %p253 = por %p251, %p252
    %p254 = scmp.ne.s32.totalorder %s242, %s243
    %p255 = scmp.eq.s32.totalorder %s23, 1
    %p256 = por %p254, %p255
    %p258 = scmp.ne.s32.totalorder %s243, %s257
    %p259 = scmp.eq.s32.totalorder %s23, 0
    %p260 = por %p258, %p259
    %s261 = ssub.s32 %s17, %s24
    %p262 = scmp.eq.s32.totalorder %s261, 0
    %s264 = sadd.s32 %s263, 1
    %s265 = scalar_select %p262, %s263, %s264
    %p268 = pneg %p262
    %p269 = scmp.eq.s32.totalorder %s17, 1
    %p270 = por %p268, %p269
    %p271 = scmp.ne.s32.totalorder %s263, %s266
    %p272 = scmp.eq.s32.totalorder %s17, 0
    %p273 = por %p271, %p272
    %p274 = scmp.ne.s32.totalorder %s263, %s266
    %p275 = scmp.eq.s32.totalorder %s22, 1
    %p276 = por %p274, %p275
    %p277 = scmp.ne.s32.totalorder %s266, %s267
    %p278 = scmp.eq.s32.totalorder %s22, 0
    %p279 = por %p277, %p278
    %p280 = scmp.ne.s32.totalorder %s266, %s267
    %p281 = scmp.eq.s32.totalorder %s23, 1
    %p282 = por %p280, %p281
    %p284 = scmp.ne.s32.totalorder %s267, %s283
    %p285 = scmp.eq.s32.totalorder %s23, 0
    %p286 = por %p284, %p285
    %p287 = scmp.le.s32.totalorder 1, %s17
    %p288 = scmp.lt.s32.totalorder %s17, 3
    %p289 = pnand %p287, %p288
    %p290 = pneg %p289
    // Predicated region
    $region9: #{_lambda_.1} parent=5 // pred_check
      _
    $region10: #{_lambda_.1} parent=5 // pred_check_branch
      %292 = sbr.rel (%p289) target = $region12
    $region11: #{_lambda_.1} parent=5 // pred_region
      %s293 = ssub.s32 %s17, 1
      // Predicated region
      $region13: #{_lambda_.1} parent=11 // pred_check
        %p294 = pneg %p64
      $region14: #{_lambda_.1} parent=11 // pred_check_branch
        %296 = sbr.rel (%p294) target = $region16
      $region15: #{_lambda_.1} parent=11 // pred_region
        _
      $region16: #{_lambda_.1} parent=11 // pred_fallthru
        _
      // Predicated region
      $region17: #{_lambda_.1} parent=11 // pred_check
        %p297 = pneg %p85
      $region18: #{_lambda_.1} parent=11 // pred_check_branch
        %299 = sbr.rel (%p297) target = $region20
      $region19: #{_lambda_.1} parent=11 // pred_region
        _
      $region20: #{_lambda_.1} parent=11 // pred_fallthru
        _
      // Predicated region
      $region21: #{_lambda_.1} parent=11 // pred_check
        %p300 = pneg %p106
      $region22: #{_lambda_.1} parent=11 // pred_check_branch
        %302 = sbr.rel (%p300) target = $region24
      $region23: #{_lambda_.1} parent=11 // pred_region
        _
      $region24: #{_lambda_.1} parent=11 // pred_fallthru
        _
      // Predicated region
      $region25: #{_lambda_.1} parent=11 // pred_check
        %p303 = pneg %p127
      $region26: #{_lambda_.1} parent=11 // pred_check_branch
        %305 = sbr.rel (%p303) target = $region28
      $region27: #{_lambda_.1} parent=11 // pred_region
        _
      $region28: #{_lambda_.1} parent=11 // pred_fallthru
        _
      // Predicated region
      $region29: #{_lambda_.1} parent=11 // pred_check
        %p306 = pneg %p148
      $region30: #{_lambda_.1} parent=11 // pred_check_branch
        %308 = sbr.rel (%p306) target = $region32
      $region31: #{_lambda_.1} parent=11 // pred_region
        _
      $region32: #{_lambda_.1} parent=11 // pred_fallthru
        _
      // Predicated region
      $region33: #{_lambda_.1} parent=11 // pred_check
        %p309 = pneg %p169
      $region34: #{_lambda_.1} parent=11 // pred_check_branch
        %311 = sbr.rel (%p309) target = $region36
      $region35: #{_lambda_.1} parent=11 // pred_region
        _
      $region36: #{_lambda_.1} parent=11 // pred_fallthru
        _
      // Predicated region
      $region37: #{_lambda_.1} parent=11 // pred_check
        %p312 = pneg %p190
      $region38: #{_lambda_.1} parent=11 // pred_check_branch
        %314 = sbr.rel (%p312) target = $region40
      $region39: #{_lambda_.1} parent=11 // pred_region
        _
      $region40: #{_lambda_.1} parent=11 // pred_fallthru
        _
      // Predicated region
      $region41: #{_lambda_.1} parent=11 // pred_check
        %p315 = pneg %p211
      $region42: #{_lambda_.1} parent=11 // pred_check_branch
        %317 = sbr.rel (%p315) target = $region44
      $region43: #{_lambda_.1} parent=11 // pred_region
        _
      $region44: #{_lambda_.1} parent=11 // pred_fallthru
        _
      // Predicated region
      $region45: #{_lambda_.1} parent=11 // pred_check
        %p318 = pneg %p232
      $region46: #{_lambda_.1} parent=11 // pred_check_branch
        %320 = sbr.rel (%p318) target = $region48
      $region47: #{_lambda_.1} parent=11 // pred_region
        _
      $region48: #{_lambda_.1} parent=11 // pred_fallthru
        _
      // Predicated region
      $region49: #{_lambda_.1} parent=11 // pred_check
        %p321 = pneg %p253
      $region50: #{_lambda_.1} parent=11 // pred_check_branch
        %323 = sbr.rel (%p321) target = $region52
      $region51: #{_lambda_.1} parent=11 // pred_region
        _
      $region52: #{_lambda_.1} parent=11 // pred_fallthru
        _
    $region12: #{_lambda_.1} parent=5 // pred_fallthru
      _
    %p324 = scmp.lt.s32.totalorder %s17, 2
    // Predicated region
    $region53: #{_lambda_.1} parent=5 // pred_check
      %p325 = pneg %p324
    $region54: #{_lambda_.1} parent=5 // pred_check_branch
      %327 = sbr.rel (%p325) target = $region56
    $region55: #{_lambda_.1} parent=5 // pred_region
      // Predicated region
      $region57: #{_lambda_.1} parent=55 // pred_check
        %p328 = pneg %p37
      $region58: #{_lambda_.1} parent=55 // pred_check_branch
        %330 = sbr.rel (%p328) target = $region60
      $region59: #{_lambda_.1} parent=55 // pred_region
        %s331 = smul.u32 2, %s17
        %p332 = scmp.lt.s32.totalorder %s331, 3
        %s333 = scalar_select %p332, %s331, 3
        %s334 = smul.addr %s333, 8
        %s335 = scalar_lea.vmem %s0, %s334
        %s336 = smul.u32 2, %s17
      $region60: #{_lambda_.1} parent=55 // pred_fallthru
        _
    $region56: #{_lambda_.1} parent=5 // pred_fallthru
      _
    %p337 = scmp.le.s32.totalorder 1, %s17
    %p338 = scmp.lt.s32.totalorder %s17, 3
    %p339 = pnand %p337, %p338
    %p340 = pneg %p339
    // Predicated region
    $region61: #{_lambda_.1} parent=5 // pred_check
      _
    $region62: #{_lambda_.1} parent=5 // pred_check_branch
      %342 = sbr.rel (%p339) target = $region64
    $region63: #{_lambda_.1} parent=5 // pred_region
      %s343 = ssub.s32 %s17, 1
      %s344 = smul.u32 2, %s22
      %p345 = scmp.lt.s32.totalorder %s344, 3
      %s346 = scalar_select %p345, %s344, 3
      %s347 = smul.addr %s346, 8
      %s348 = scalar_lea.vmem %s0, %s347
      %p349 = pneg %p43
      %p350 = pneg %p40
      %p351 = pneg %p64
      %p352 = pneg %p61
      %p353 = pneg %p85
      %p354 = pneg %p82
      %p355 = pneg %p106
      %p356 = pneg %p103
      %p357 = pneg %p127
      %p358 = pneg %p124
      %p359 = pneg %p148
      %p360 = pneg %p145
      %p361 = pneg %p169
      %p362 = pneg %p166
      %p363 = pneg %p190
      %p364 = pneg %p187
      %p365 = pneg %p211
      %p366 = pneg %p208
      %p367 = pneg %p232
      %p368 = pneg %p229
      %p369 = pneg %p253
      %p370 = pneg %p250
      %p371 = pneg %p279
      %p372 = pneg %p276
      %s373 = smul.u32 2, %s22
      %p374 = scmp.lt.s32.totalorder %s373, 3
      %s375 = scalar_select %p374, %s373, 3
      %s376 = smul.addr %s375, 8
      %s377 = scalar_lea.vmem %s11, %s376
      %s378 = smul.u32 2, %s22
      %p379 = scmp.lt.s32.totalorder %s378, 3
      %s380 = scalar_select %p379, %s378, 3
      %s381 = smul.addr %s380, 8
      %s382 = scalar_lea.vmem %s0, %s381
      %s383 = smul.u32 2, %s22
      %s384 = smul.u32 2, %s22
      %p385 = scmp.lt.s32.totalorder %s384, 3
      %s386 = scalar_select %p385, %s384, 3
      %s387 = smul.addr %s386, 8
      %s388 = scalar_lea.vmem %s11, %s387
      %s389 = smul.u32 2, %s22
      %v390 = vld [vmem:[%s382] sm:$0xff]
      %v391 = vld [vmem:[%s382 + $0x8] sm:$0xff]
      %v392 = vld [vmem:[%s1] sm:$0xff]
      %v393 = vld [vmem:[%s1 + $0x8] sm:$0xff]
      %v394 = vld [vmem:[%s1 + $0x10] sm:$0xff]
      %v395 = vld [vmem:[%s1 + $0x18] sm:$0xff]
      %v396 = vld [vmem:[%s1 + $0x20] sm:$0xff]
      %v397 = vld [vmem:[%s1 + $0x28] sm:$0xff]
      %v398 = vld [vmem:[%s1 + $0x30] sm:$0xff]
      %v399 = vld [vmem:[%s1 + $0x38] sm:$0xff]
      %v400 = vld [vmem:[%s1 + $0x40] sm:$0xff]
      %v401 = vld [vmem:[%s1 + $0x48] sm:$0xff]
      %v402 = vld [vmem:[%s1 + $0x50] sm:$0xff]
      %v403 = vld [vmem:[%s1 + $0x58] sm:$0xff]
      %v404 = vld [vmem:[%s1 + $0x60] sm:$0xff]
      %v405 = vld [vmem:[%s1 + $0x68] sm:$0xff]
      %v406 = vld [vmem:[%s1 + $0x70] sm:$0xff]
      %v407 = vld [vmem:[%s2] sm:$0x1]
      %v409 = vlaneseq
      %v410 = vshrl.u32 %v409, 7
      %v411 = vsub.s32 0, %v410
      %v412 = vrot.slane %v407, %v411
      %vm414 = vcmask 982016
      %v416 = vsel %vm414, %v390, 0
      %v419 = vsel %vm414, %v391, 0
      %421 = vmatprep.subr.mxu0 0.0
      %422 = vmatpush1.msra.mxu0 %v392
      %423 = vmatprep.subr.mxu0 0.0
      %424 = vmatpush1.msra.mxu0 %v393
      %425 = vmatprep.subr.mxu0 0.0
      %426 = vmatpush1.msra.mxu0 %v394
      %427 = vmatprep.subr.mxu0 0.0
      %428 = vmatpush1.msra.mxu0 %v395
      %429 = vmatprep.subr.mxu0 0.0
      %430 = vmatpush1.msra.mxu0 %v396
      %431 = vmatprep.subr.mxu0 0.0
      %432 = vmatpush1.msra.mxu0 %v397
      %433 = vmatprep.subr.mxu0 0.0
      %434 = vmatpush1.msra.mxu0 %v398
      %435 = vmatprep.subr.mxu0 0.0
      %436 = vmatpush1.msra.mxu0 %v399
      %437 = vmatprep.subr.mxu0 0.0
      %438 = vmatpush1.msra.mxu0 %v400
      %439 = vmatprep.subr.mxu0 0.0
      %440 = vmatpush1.msra.mxu0 %v401
      %441 = vmatprep.subr.mxu0 0.0
      %442 = vmatpush1.msra.mxu0 %v402
      %443 = vmatprep.subr.mxu0 0.0
      %444 = vmatpush1.msra.mxu0 %v403
      %445 = vmatprep.subr.mxu0 0.0
      %446 = vmatpush1.msra.mxu0 %v404
      %447 = vmatprep.subr.mxu0 0.0
      %448 = vmatpush1.msra.mxu0 %v405
      %449 = vmatprep.subr.mxu0 0.0
      %450 = vmatpush1.msra.mxu0 %v406
      %451 = vmatprep.subr.mxu0 0.0
      %452 = vmatpush1.msra.mxu0 0.0
      %453 = vmatprep.subr.mxu0 0.0
      %454 = vmatpush1.msra.mxu0 0.0
      %455 = vmatprep.subr.mxu0 0.0
      %456 = vmatpush1.msra.mxu0 0.0
      %457 = vmatprep.subr.mxu0 0.0
      %458 = vmatpush1.msra.mxu0 0.0
      %459 = vmatprep.subr.mxu0 0.0
      %460 = vmatpush1.msra.mxu0 0.0
      %461 = vmatprep.subr.mxu0 0.0
      %462 = vmatpush1.msra.mxu0 0.0
      %463 = vmatprep.subr.mxu0 0.0
      %464 = vmatpush1.msra.mxu0 0.0
      %465 = vmatprep.subr.mxu0 0.0
      %466 = vmatpush1.msra.mxu0 0.0
      %467 = vmatprep.subr.mxu0 0.0
      %468 = vmatpush1.msra.mxu0 0.0
      %469 = vmatprep.subr.mxu0 0.0
      %470 = vmatpush1.msra.mxu0 0.0
      %471 = vmatprep.subr.mxu0 0.0
      %472 = vmatpush1.msra.mxu0 0.0
      %473 = vmatprep.subr.mxu0 0.0
      %474 = vmatpush1.msra.mxu0 0.0
      %475 = vmatprep.subr.mxu0 0.0
      %476 = vmatpush1.msra.mxu0 0.0
      %477 = vmatprep.subr.mxu0 0.0
      %478 = vmatpush1.msra.mxu0 0.0
      %479 = vmatprep.subr.mxu0 0.0
      %480 = vmatpush1.msra.mxu0 0.0
      %481 = vmatprep.subr.mxu0 0.0
      %482 = vmatpush1.msra.mxu0 0.0
      %483 = vmatprep.subr.mxu0 0.0
      %484 = vmatpush1.msra.mxu0 0.0
      %485 = vmatprep.mubr.f32.mxu0 0.0
      %486 = vmatmul.mubr.f32.gmra.mrb[0].mxu0 %v416
      %v487 = vpop.f32.mrb[0].mxu0
      %v488 = vadd.f32 %v412, %v487
      %v489 = vpop.f32.mrb[0].mxu0
      %490 = vmatprep.mubr.f32.mxu0 0.0
      %491 = vmatmul.mubr.f32.gmra.mrb[0].mxu0 %v419
      %v492 = vpop.f32.mrb[0].mxu0
      %v493 = vadd.f32 %v412, %v492
      %v494 = vpop.f32.mrb[0].mxu0
      %495 = vdwg.mxu0
      %v496 = vmax.f32 %v488, 0.0
      %v497 = vmax.f32 %v493, 0.0
      %v499 = vrot.slane %v496, 7
      %v502 = vrot.slane %v497, 7
      %vm504 = vcmask 1040384
      %v505 = vsel %vm504, 0.0, %v499
      %v506 = vsel %vm504, 0.0, %v502
      %v507 = vrot.slane %v496, 1
      %v509 = vrot.slane %v497, 1
      %vm511 = vcmask 1046528
      %v512 = vsel %vm511, %v507, 0.0
      %v513 = vsel %vm511, %v509, 0.0
      %v514 = vld [vmem:[%s3] sm:$0xff]
      %v515 = vld [vmem:[%s3 + $0x8] sm:$0xff]
      %v516 = vld [vmem:[%s3 + $0x10] sm:$0xff]
      %v517 = vld [vmem:[%s3 + $0x18] sm:$0xff]
      %v518 = vld [vmem:[%s3 + $0x20] sm:$0xff]
      %v519 = vld [vmem:[%s3 + $0x28] sm:$0xff]
      %v520 = vld [vmem:[%s3 + $0x30] sm:$0xff]
      %v521 = vld [vmem:[%s3 + $0x38] sm:$0xff]
      %v522 = vld [vmem:[%s3 + $0x40] sm:$0xff]
      %v523 = vld [vmem:[%s3 + $0x48] sm:$0xff]
      %v524 = vld [vmem:[%s3 + $0x50] sm:$0xff]
      %v525 = vld [vmem:[%s3 + $0x58] sm:$0xff]
      %v526 = vld [vmem:[%s3 + $0x60] sm:$0xff]
      %v527 = vld [vmem:[%s3 + $0x68] sm:$0xff]
      %v528 = vld [vmem:[%s3 + $0x70] sm:$0xff]
      %v529 = vld [vmem:[%s3 + $0x78] sm:$0xff]
      %v530 = vld [vmem:[%s3 + $0x80] sm:$0xff]
      %v531 = vld [vmem:[%s3 + $0x88] sm:$0xff]
      %v532 = vld [vmem:[%s3 + $0x90] sm:$0xff]
      %v533 = vld [vmem:[%s3 + $0x98] sm:$0xff]
      %v534 = vld [vmem:[%s3 + $0xa0] sm:$0xff]
      %v535 = vld [vmem:[%s3 + $0xa8] sm:$0xff]
      %v536 = vld [vmem:[%s3 + $0xb0] sm:$0xff]
      %v537 = vld [vmem:[%s3 + $0xb8] sm:$0xff]
      %v538 = vld [vmem:[%s3 + $0xc0] sm:$0xff]
      %v539 = vld [vmem:[%s3 + $0xc8] sm:$0xff]
      %v540 = vld [vmem:[%s3 + $0xd0] sm:$0xff]
      %v541 = vld [vmem:[%s3 + $0xd8] sm:$0xff]
      %v542 = vld [vmem:[%s3 + $0xe0] sm:$0xff]
      %v543 = vld [vmem:[%s3 + $0xe8] sm:$0xff]
      %v544 = vld [vmem:[%s3 + $0xf0] sm:$0xff]
      %v545 = vld [vmem:[%s3 + $0xf8] sm:$0xff]
      %v546 = vld [vmem:[%s3 + $0x100] sm:$0xff]
      %v547 = vld [vmem:[%s3 + $0x108] sm:$0xff]
      %v548 = vld [vmem:[%s3 + $0x110] sm:$0xff]
      %v549 = vld [vmem:[%s3 + $0x118] sm:$0xff]
      %v550 = vld [vmem:[%s3 + $0x120] sm:$0xff]
      %v551 = vld [vmem:[%s3 + $0x128] sm:$0xff]
      %v552 = vld [vmem:[%s3 + $0x130] sm:$0xff]
      %v553 = vld [vmem:[%s3 + $0x138] sm:$0xff]
      %v554 = vld [vmem:[%s3 + $0x140] sm:$0xff]
      %v555 = vld [vmem:[%s3 + $0x148] sm:$0xff]
      %v556 = vld [vmem:[%s3 + $0x150] sm:$0xff]
      %v557 = vld [vmem:[%s3 + $0x158] sm:$0xff]
      %v558 = vld [vmem:[%s3 + $0x160] sm:$0xff]
      %v559 = vld [vmem:[%s3 + $0x168] sm:$0xff]
      %v560 = vld [vmem:[%s3 + $0x170] sm:$0xff]
      %v561 = vld [vmem:[%s3 + $0x178] sm:$0xff]
      %v562 = vld [vmem:[%s4] sm:$0x1]
      %v564 = vlaneseq
      %v565 = vshrl.u32 %v564, 7
      %v566 = vsub.s32 0, %v565
      %v567 = vrot.slane %v562, %v566
      %569 = vmatprep.subr.mxu0 0.0
      %570 = vmatpush1.msra.mxu0 %v514
      %571 = vmatprep.subr.mxu0 0.0
      %572 = vmatpush1.msra.mxu0 %v515
      %573 = vmatprep.subr.mxu0 0.0
      %574 = vmatpush1.msra.mxu0 %v516
      %575 = vmatprep.subr.mxu0 0.0
      %576 = vmatpush1.msra.mxu0 %v517
      %577 = vmatprep.subr.mxu0 0.0
      %578 = vmatpush1.msra.mxu0 %v518
      %579 = vmatprep.subr.mxu0 0.0
      %580 = vmatpush1.msra.mxu0 %v519
      %581 = vmatprep.subr.mxu0 0.0
      %582 = vmatpush1.msra.mxu0 %v520
      %583 = vmatprep.subr.mxu0 0.0
      %584 = vmatpush1.msra.mxu0 %v521
      %585 = vmatprep.subr.mxu0 0.0
      %586 = vmatpush1.msra.mxu0 %v522
      %587 = vmatprep.subr.mxu0 0.0
      %588 = vmatpush1.msra.mxu0 %v523
      %589 = vmatprep.subr.mxu0 0.0
      %590 = vmatpush1.msra.mxu0 %v524
      %591 = vmatprep.subr.mxu0 0.0
      %592 = vmatpush1.msra.mxu0 %v525
      %593 = vmatprep.subr.mxu0 0.0
      %594 = vmatpush1.msra.mxu0 %v526
      %595 = vmatprep.subr.mxu0 0.0
      %596 = vmatpush1.msra.mxu0 %v527
      %597 = vmatprep.subr.mxu0 0.0
      %598 = vmatpush1.msra.mxu0 %v528
      %599 = vmatprep.subr.mxu0 0.0
      %600 = vmatpush1.msra.mxu0 %v529
      %601 = vmatprep.subr.mxu0 0.0
      %602 = vmatpush1.msra.mxu0 %v530
      %603 = vmatprep.subr.mxu0 0.0
      %604 = vmatpush1.msra.mxu0 %v531
      %605 = vmatprep.subr.mxu0 0.0
      %606 = vmatpush1.msra.mxu0 %v532
      %607 = vmatprep.subr.mxu0 0.0
      %608 = vmatpush1.msra.mxu0 %v533
      %609 = vmatprep.subr.mxu0 0.0
      %610 = vmatpush1.msra.mxu0 %v534
      %611 = vmatprep.subr.mxu0 0.0
      %612 = vmatpush1.msra.mxu0 %v535
      %613 = vmatprep.subr.mxu0 0.0
      %614 = vmatpush1.msra.mxu0 %v536
      %615 = vmatprep.subr.mxu0 0.0
      %616 = vmatpush1.msra.mxu0 %v537
      %617 = vmatprep.subr.mxu0 0.0
      %618 = vmatpush1.msra.mxu0 %v538
      %619 = vmatprep.subr.mxu0 0.0
      %620 = vmatpush1.msra.mxu0 %v539
      %621 = vmatprep.subr.mxu0 0.0
      %622 = vmatpush1.msra.mxu0 %v540
      %623 = vmatprep.subr.mxu0 0.0
      %624 = vmatpush1.msra.mxu0 %v541
      %625 = vmatprep.subr.mxu0 0.0
      %626 = vmatpush1.msra.mxu0 %v542
      %627 = vmatprep.subr.mxu0 0.0
      %628 = vmatpush1.msra.mxu0 %v543
      %629 = vmatprep.subr.mxu0 0.0
      %630 = vmatpush1.msra.mxu0 %v544
      %631 = vmatprep.subr.mxu0 0.0
      %632 = vmatpush1.msra.mxu0 %v545
      %633 = vmatprep.mubr.f32.mxu0 %v496
      %634 = vmatmul.mubr.f32.gmra.mrb[0].mxu0 %v505
      %v635 = vpop.f32.mrb[0].mxu0
      %v636 = vadd.f32 %v567, %v635
      %v637 = vpop.f32.mrb[0].mxu0
      %638 = vmatprep.mubr.f32.mxu0 %v497
      %639 = vmatmul.mubr.f32.gmra.mrb[0].mxu0 %v506
      %v640 = vpop.f32.mrb[0].mxu0
      %v641 = vadd.f32 %v567, %v640
      %v642 = vpop.f32.mrb[0].mxu0
      %643 = vdwg.mxu0
      %644 = vmatprep.subr.mxu0 0.0
      %645 = vmatpush1.msra.mxu0 %v546
      %646 = vmatprep.subr.mxu0 0.0
      %647 = vmatpush1.msra.mxu0 %v547
      %648 = vmatprep.subr.mxu0 0.0
      %649 = vmatpush1.msra.mxu0 %v548
      %650 = vmatprep.subr.mxu0 0.0
      %651 = vmatpush1.msra.mxu0 %v549
      %652 = vmatprep.subr.mxu0 0.0
      %653 = vmatpush1.msra.mxu0 %v550
      %654 = vmatprep.subr.mxu0 0.0
      %655 = vmatpush1.msra.mxu0 %v551
      %656 = vmatprep.subr.mxu0 0.0
      %657 = vmatpush1.msra.mxu0 %v552
      %658 = vmatprep.subr.mxu0 0.0
      %659 = vmatpush1.msra.mxu0 %v553
      %660 = vmatprep.subr.mxu0 0.0
      %661 = vmatpush1.msra.mxu0 %v554
      %662 = vmatprep.subr.mxu0 0.0
      %663 = vmatpush1.msra.mxu0 %v555
      %664 = vmatprep.subr.mxu0 0.0
      %665 = vmatpush1.msra.mxu0 %v556
      %666 = vmatprep.subr.mxu0 0.0
      %667 = vmatpush1.msra.mxu0 %v557
      %668 = vmatprep.subr.mxu0 0.0
      %669 = vmatpush1.msra.mxu0 %v558
      %670 = vmatprep.subr.mxu0 0.0
      %671 = vmatpush1.msra.mxu0 %v559
      %672 = vmatprep.subr.mxu0 0.0
      %673 = vmatpush1.msra.mxu0 %v560
      %674 = vmatprep.subr.mxu0 0.0
      %675 = vmatpush1.msra.mxu0 %v561
      %676 = vmatprep.subr.mxu0 0.0
      %677 = vmatpush1.msra.mxu0 0.0
      %678 = vmatprep.subr.mxu0 0.0
      %679 = vmatpush1.msra.mxu0 0.0
      %680 = vmatprep.subr.mxu0 0.0
      %681 = vmatpush1.msra.mxu0 0.0
      %682 = vmatprep.subr.mxu0 0.0
      %683 = vmatpush1.msra.mxu0 0.0
      %684 = vmatprep.subr.mxu0 0.0
      %685 = vmatpush1.msra.mxu0 0.0
      %686 = vmatprep.subr.mxu0 0.0
      %687 = vmatpush1.msra.mxu0 0.0
      %688 = vmatprep.subr.mxu0 0.0
      %689 = vmatpush1.msra.mxu0 0.0
      %690 = vmatprep.subr.mxu0 0.0
      %691 = vmatpush1.msra.mxu0 0.0
      %692 = vmatprep.subr.mxu0 0.0
      %693 = vmatpush1.msra.mxu0 0.0
      %694 = vmatprep.subr.mxu0 0.0
      %695 = vmatpush1.msra.mxu0 0.0
      %696 = vmatprep.subr.mxu0 0.0
      %697 = vmatpush1.msra.mxu0 0.0
      %698 = vmatprep.subr.mxu0 0.0
      %699 = vmatpush1.msra.mxu0 0.0
      %700 = vmatprep.subr.mxu0 0.0
      %701 = vmatpush1.msra.mxu0 0.0
      %702 = vmatprep.subr.mxu0 0.0
      %703 = vmatpush1.msra.mxu0 0.0
      %704 = vmatprep.subr.mxu0 0.0
      %705 = vmatpush1.msra.mxu0 0.0
      %706 = vmatprep.subr.mxu0 0.0
      %707 = vmatpush1.msra.mxu0 0.0
      %708 = vmatprep.mubr.f32.mxu0 0.0
      %709 = vmatmul.mubr.f32.gmra.mrb[0].mxu0 %v512
      %v710 = vpop.f32.mrb[0].mxu0
      %v711 = vadd.f32 %v636, %v710
      %v712 = vpop.f32.mrb[0].mxu0
      %713 = vmatprep.mubr.f32.mxu0 0.0
      %714 = vmatmul.mubr.f32.gmra.mrb[0].mxu0 %v513
      %v715 = vpop.f32.mrb[0].mxu0
      %v716 = vadd.f32 %v641, %v715
      %v717 = vpop.f32.mrb[0].mxu0
      %718 = vdwg.mxu0
      %v719 = vmax.f32 %v711, 0.0
      %v720 = vmax.f32 %v716, 0.0
      %v721 = vld [vmem:[%s5] sm:$0xff]
      %v722 = vld [vmem:[%s5 + $0x8] sm:$0xff]
      %v723 = vld [vmem:[%s5 + $0x10] sm:$0xff]
      %v724 = vld [vmem:[%s5 + $0x18] sm:$0xff]
      %v725 = vld [vmem:[%s5 + $0x20] sm:$0xff]
      %v726 = vld [vmem:[%s5 + $0x28] sm:$0xff]
      %v727 = vld [vmem:[%s5 + $0x30] sm:$0xff]
      %v728 = vld [vmem:[%s5 + $0x38] sm:$0xff]
      %v729 = vld [vmem:[%s5 + $0x40] sm:$0xff]
      %v730 = vld [vmem:[%s5 + $0x48] sm:$0xff]
      %v731 = vld [vmem:[%s5 + $0x50] sm:$0xff]
      %v732 = vld [vmem:[%s5 + $0x58] sm:$0xff]
      %v733 = vld [vmem:[%s5 + $0x60] sm:$0xff]
      %v734 = vld [vmem:[%s5 + $0x68] sm:$0xff]
      %v735 = vld [vmem:[%s5 + $0x70] sm:$0xff]
      %v736 = vld [vmem:[%s5 + $0x78] sm:$0xff]
      %v737 = vld [vmem:[%s6] sm:$0x1]
      %v739 = vlaneseq
      %v740 = vshrl.u32 %v739, 7
      %v741 = vsub.s32 0, %v740
      %v742 = vrot.slane %v737, %v741
      %744 = vmatprep.subr.mxu0 0.0
      %745 = vmatpush1.msra.mxu0 %v721
      %746 = vmatprep.subr.mxu0 0.0
      %747 = vmatpush1.msra.mxu0 %v722
      %748 = vmatprep.subr.mxu0 0.0
      %749 = vmatpush1.msra.mxu0 %v723
      %750 = vmatprep.subr.mxu0 0.0
      %751 = vmatpush1.msra.mxu0 %v724
      %752 = vmatprep.subr.mxu0 0.0
      %753 = vmatpush1.msra.mxu0 %v725
      %754 = vmatprep.subr.mxu0 0.0
      %755 = vmatpush1.msra.mxu0 %v726
      %756 = vmatprep.subr.mxu0 0.0
      %757 = vmatpush1.msra.mxu0 %v727
      %758 = vmatprep.subr.mxu0 0.0
      %759 = vmatpush1.msra.mxu0 %v728
      %760 = vmatprep.subr.mxu0 0.0
      %761 = vmatpush1.msra.mxu0 %v729
      %762 = vmatprep.subr.mxu0 0.0
      %763 = vmatpush1.msra.mxu0 %v730
      %764 = vmatprep.subr.mxu0 0.0
      %765 = vmatpush1.msra.mxu0 %v731
      %766 = vmatprep.subr.mxu0 0.0
      %767 = vmatpush1.msra.mxu0 %v732
      %768 = vmatprep.subr.mxu0 0.0
      %769 = vmatpush1.msra.mxu0 %v733
      %770 = vmatprep.subr.mxu0 0.0
      %771 = vmatpush1.msra.mxu0 %v734
      %772 = vmatprep.subr.mxu0 0.0
      %773 = vmatpush1.msra.mxu0 %v735
      %774 = vmatprep.subr.mxu0 0.0
      %775 = vmatpush1.msra.mxu0 %v736
      %776 = vmatprep.subr.mxu0 0.0
      %777 = vmatpush1.msra.mxu0 0.0
      %778 = vmatprep.subr.mxu0 0.0
      %779 = vmatpush1.msra.mxu0 0.0
      %780 = vmatprep.subr.mxu0 0.0
      %781 = vmatpush1.msra.mxu0 0.0
      %782 = vmatprep.subr.mxu0 0.0
      %783 = vmatpush1.msra.mxu0 0.0
      %784 = vmatprep.subr.mxu0 0.0
      %785 = vmatpush1.msra.mxu0 0.0
      %786 = vmatprep.subr.mxu0 0.0
      %787 = vmatpush1.msra.mxu0 0.0
      %788 = vmatprep.subr.mxu0 0.0
      %789 = vmatpush1.msra.mxu0 0.0
      %790 = vmatprep.subr.mxu0 0.0
      %791 = vmatpush1.msra.mxu0 0.0
      %792 = vmatprep.subr.mxu0 0.0
      %793 = vmatpush1.msra.mxu0 0.0
      %794 = vmatprep.subr.mxu0 0.0
      %795 = vmatpush1.msra.mxu0 0.0
      %796 = vmatprep.subr.mxu0 0.0
      %797 = vmatpush1.msra.mxu0 0.0
      %798 = vmatprep.subr.mxu0 0.0
      %799 = vmatpush1.msra.mxu0 0.0
      %800 = vmatprep.subr.mxu0 0.0
      %801 = vmatpush1.msra.mxu0 0.0
      %802 = vmatprep.subr.mxu0 0.0
      %803 = vmatpush1.msra.mxu0 0.0
      %804 = vmatprep.subr.mxu0 0.0
      %805 = vmatpush1.msra.mxu0 0.0
      %806 = vmatprep.subr.mxu0 0.0
      %807 = vmatpush1.msra.mxu0 0.0
      %808 = vmatprep.mubr.f32.mxu0 0.0
      %809 = vmatmul.mubr.f32.gmra.mrb[0].mxu0 %v719
      %v810 = vpop.f32.mrb[0].mxu0
      %v811 = vadd.f32 %v742, %v810
      %v812 = vpop.f32.mrb[0].mxu0
      %813 = vmatprep.mubr.f32.mxu0 0.0
      %814 = vmatmul.mubr.f32.gmra.mrb[0].mxu0 %v720
      %v815 = vpop.f32.mrb[0].mxu0
      %v816 = vadd.f32 %v742, %v815
      %v817 = vpop.f32.mrb[0].mxu0
      %818 = vdwg.mxu0
      %v819 = vld [vmem:[%s7] sm:$0xff]
      %v820 = vld [vmem:[%s7 + $0x8] sm:$0xff]
      %vm821 = vcmask 130048
      %v823 = vsel %vm821, %v819, 0
      %v826 = vsel %vm821, %v820, 0
      %828 = vmatprep.subr.mxu0 0.0
      %829 = vmatpush1.msra.mxu0 %v811
      %830 = vmatprep.subr.mxu0 0.0
      %831 = vmatpush1.msra.mxu0 %v816
      %832 = vmatprep.subr.mxu0 0.0
      %833 = vmatpush1.msra.mxu0 0.0
      %834 = vmatprep.subr.mxu0 0.0
      %835 = vmatpush1.msra.mxu0 0.0
      %836 = vmatprep.subr.mxu0 0.0
      %837 = vmatpush1.msra.mxu0 0.0
      %838 = vmatprep.subr.mxu0 0.0
      %839 = vmatpush1.msra.mxu0 0.0
      %840 = vmatprep.subr.mxu0 0.0
      %841 = vmatpush1.msra.mxu0 0.0
      %842 = vmatprep.subr.mxu0 0.0
      %843 = vmatpush1.msra.mxu0 0.0
      %844 = vmatprep.subr.mxu0 0.0
      %845 = vmatpush1.msra.mxu0 0.0
      %846 = vmatprep.subr.mxu0 0.0
      %847 = vmatpush1.msra.mxu0 0.0
      %848 = vmatprep.subr.mxu0 0.0
      %849 = vmatpush1.msra.mxu0 0.0
      %850 = vmatprep.subr.mxu0 0.0
      %851 = vmatpush1.msra.mxu0 0.0
      %852 = vmatprep.subr.mxu0 0.0
      %853 = vmatpush1.msra.mxu0 0.0
      %854 = vmatprep.subr.mxu0 0.0
      %855 = vmatpush1.msra.mxu0 0.0
      %856 = vmatprep.subr.mxu0 0.0
      %857 = vmatpush1.msra.mxu0 0.0
      %858 = vmatprep.subr.mxu0 0.0
      %859 = vmatpush1.msra.mxu0 0.0
      %860 = vmatprep.subr.mxu0 0.0
      %861 = vmatpush1.msra.mxu0 0.0
      %862 = vmatprep.subr.mxu0 0.0
      %863 = vmatpush1.msra.mxu0 0.0
      %864 = vmatprep.subr.mxu0 0.0
      %865 = vmatpush1.msra.mxu0 0.0
      %866 = vmatprep.subr.mxu0 0.0
      %867 = vmatpush1.msra.mxu0 0.0
      %868 = vmatprep.subr.mxu0 0.0
      %869 = vmatpush1.msra.mxu0 0.0
      %870 = vmatprep.subr.mxu0 0.0
      %871 = vmatpush1.msra.mxu0 0.0
      %872 = vmatprep.subr.mxu0 0.0
      %873 = vmatpush1.msra.mxu0 0.0
      %874 = vmatprep.subr.mxu0 0.0
      %875 = vmatpush1.msra.mxu0 0.0
      %876 = vmatprep.subr.mxu0 0.0
      %877 = vmatpush1.msra.mxu0 0.0
      %878 = vmatprep.subr.mxu0 0.0
      %879 = vmatpush1.msra.mxu0 0.0
      %880 = vmatprep.subr.mxu0 0.0
      %881 = vmatpush1.msra.mxu0 0.0
      %882 = vmatprep.subr.mxu0 0.0
      %883 = vmatpush1.msra.mxu0 0.0
      %884 = vmatprep.subr.mxu0 0.0
      %885 = vmatpush1.msra.mxu0 0.0
      %886 = vmatprep.subr.mxu0 0.0
      %887 = vmatpush1.msra.mxu0 0.0
      %888 = vmatprep.subr.mxu0 0.0
      %889 = vmatpush1.msra.mxu0 0.0
      %890 = vmatprep.subr.mxu0 0.0
      %891 = vmatpush1.msra.mxu0 0.0
      %892 = vmatprep.mubr.f32.mxu0 0.0
      %893 = vmatmul.mubr.f32.gmra.mrb[0].mxu0 %v823
      %v894 = vpop.f32.mrb[0].mxu0
      %v895 = vadd.f32 0.0, %v894
      %v896 = vpop.f32.mrb[0].mxu0
      %897 = vmatprep.mubr.f32.mxu0 0.0
      %898 = vmatmul.mubr.f32.gmra.mrb[0].mxu0 %v826
      %v899 = vpop.f32.mrb[0].mxu0
      %v900 = vadd.f32 0.0, %v899
      %v901 = vpop.f32.mrb[0].mxu0
      %902 = vdwg.mxu0
      %v903 = vld [vmem:[%s8] sm:$0xff]
      %v904 = vld [vmem:[%s8 + $0x8] sm:$0xff]
      %v905 = vld [vmem:[%s8 + $0x10] sm:$0xff]
      %v906 = vld [vmem:[%s8 + $0x18] sm:$0xff]
      %v907 = vld [vmem:[%s8 + $0x20] sm:$0xff]
      %vm908 = vcmask 326656
      %v910 = vsel %vm908, %v895, 0
      %v913 = vsel %vm908, %v900, 0
      %915 = vmatprep.subr.mxu0 0.0
      %916 = vmatpush1.msra.mxu0 %v903
      %917 = vmatprep.subr.mxu0 0.0
      %918 = vmatpush1.msra.mxu0 %v904
      %919 = vmatprep.subr.mxu0 0.0
      %920 = vmatpush1.msra.mxu0 %v905
      %921 = vmatprep.subr.mxu0 0.0
      %922 = vmatpush1.msra.mxu0 %v906
      %923 = vmatprep.subr.mxu0 0.0
      %924 = vmatpush1.msra.mxu0 %v907
      %925 = vmatprep.subr.mxu0 0.0
      %926 = vmatpush1.msra.mxu0 0.0
      %927 = vmatprep.subr.mxu0 0.0
      %928 = vmatpush1.msra.mxu0 0.0
      %929 = vmatprep.subr.mxu0 0.0
      %930 = vmatpush1.msra.mxu0 0.0
      %931 = vmatprep.subr.mxu0 0.0
      %932 = vmatpush1.msra.mxu0 0.0
      %933 = vmatprep.subr.mxu0 0.0
      %934 = vmatpush1.msra.mxu0 0.0
      %935 = vmatprep.subr.mxu0 0.0
      %936 = vmatpush1.msra.mxu0 0.0
      %937 = vmatprep.subr.mxu0 0.0
      %938 = vmatpush1.msra.mxu0 0.0
      %939 = vmatprep.subr.mxu0 0.0
      %940 = vmatpush1.msra.mxu0 0.0
      %941 = vmatprep.subr.mxu0 0.0
      %942 = vmatpush1.msra.mxu0 0.0
      %943 = vmatprep.subr.mxu0 0.0
      %944 = vmatpush1.msra.mxu0 0.0
      %945 = vmatprep.subr.mxu0 0.0
      %946 = vmatpush1.msra.mxu0 0.0
      %947 = vmatprep.subr.mxu0 0.0
      %948 = vmatpush1.msra.mxu0 0.0
      %949 = vmatprep.subr.mxu0 0.0
      %950 = vmatpush1.msra.mxu0 0.0
      %951 = vmatprep.subr.mxu0 0.0
      %952 = vmatpush1.msra.mxu0 0.0
      %953 = vmatprep.subr.mxu0 0.0
      %954 = vmatpush1.msra.mxu0 0.0
      %955 = vmatprep.subr.mxu0 0.0
      %956 = vmatpush1.msra.mxu0 0.0
      %957 = vmatprep.subr.mxu0 0.0
      %958 = vmatpush1.msra.mxu0 0.0
      %959 = vmatprep.subr.mxu0 0.0
      %960 = vmatpush1.msra.mxu0 0.0
      %961 = vmatprep.subr.mxu0 0.0
      %962 = vmatpush1.msra.mxu0 0.0
      %963 = vmatprep.subr.mxu0 0.0
      %964 = vmatpush1.msra.mxu0 0.0
      %965 = vmatprep.subr.mxu0 0.0
      %966 = vmatpush1.msra.mxu0 0.0
      %967 = vmatprep.subr.mxu0 0.0
      %968 = vmatpush1.msra.mxu0 0.0
      %969 = vmatprep.subr.mxu0 0.0
      %970 = vmatpush1.msra.mxu0 0.0
      %971 = vmatprep.subr.mxu0 0.0
      %972 = vmatpush1.msra.mxu0 0.0
      %973 = vmatprep.subr.mxu0 0.0
      %974 = vmatpush1.msra.mxu0 0.0
      %975 = vmatprep.subr.mxu0 0.0
      %976 = vmatpush1.msra.mxu0 0.0
      %977 = vmatprep.subr.mxu0 0.0
      %978 = vmatpush1.msra.mxu0 0.0
      %979 = vmatprep.mubr.f32.mxu0 0.0
      %980 = vmatmul.mubr.f32.gmra.mrb[0].mxu0 %v910
      %v981 = vpop.f32.mrb[0].mxu0
      %v982 = vadd.f32 0.0, %v981
      %v983 = vpop.f32.mrb[0].mxu0
      %984 = vmatprep.mubr.f32.mxu0 0.0
      %985 = vmatmul.mubr.f32.gmra.mrb[0].mxu0 %v913
      %v986 = vpop.f32.mrb[0].mxu0
      %v987 = vadd.f32 0.0, %v986
      %v988 = vpop.f32.mrb[0].mxu0
      %989 = vdwg.mxu0
      %v990 = vmul.f32 %v982, 0.03125
      %v991 = vmul.f32 %v987, 0.03125
      %v992 = vsub.f32 %v811, %v990
      %v993 = vsub.f32 %v816, %v991
      %v994 = vmul.f32 %v992, %v992
      %v995 = vmul.f32 %v993, %v993
      %996 = vmatprep.subr.mxu0 0.0
      %997 = vmatpush1.msra.mxu0 %v994
      %998 = vmatprep.subr.mxu0 0.0
      %999 = vmatpush1.msra.mxu0 %v995
      %1000 = vmatprep.subr.mxu0 0.0
      %1001 = vmatpush1.msra.mxu0 0.0
      %1002 = vmatprep.subr.mxu0 0.0
      %1003 = vmatpush1.msra.mxu0 0.0
      %1004 = vmatprep.subr.mxu0 0.0
      %1005 = vmatpush1.msra.mxu0 0.0
      %1006 = vmatprep.subr.mxu0 0.0
      %1007 = vmatpush1.msra.mxu0 0.0
      %1008 = vmatprep.subr.mxu0 0.0
      %1009 = vmatpush1.msra.mxu0 0.0
      %1010 = vmatprep.subr.mxu0 0.0
      %1011 = vmatpush1.msra.mxu0 0.0
      %1012 = vmatprep.subr.mxu0 0.0
      %1013 = vmatpush1.msra.mxu0 0.0
      %1014 = vmatprep.subr.mxu0 0.0
      %1015 = vmatpush1.msra.mxu0 0.0
      %1016 = vmatprep.subr.mxu0 0.0
      %1017 = vmatpush1.msra.mxu0 0.0
      %1018 = vmatprep.subr.mxu0 0.0
      %1019 = vmatpush1.msra.mxu0 0.0
      %1020 = vmatprep.subr.mxu0 0.0
      %1021 = vmatpush1.msra.mxu0 0.0
      %1022 = vmatprep.subr.mxu0 0.0
      %1023 = vmatpush1.msra.mxu0 0.0
      %1024 = vmatprep.subr.mxu0 0.0
      %1025 = vmatpush1.msra.mxu0 0.0
      %1026 = vmatprep.subr.mxu0 0.0
      %1027 = vmatpush1.msra.mxu0 0.0
      %1028 = vmatprep.subr.mxu0 0.0
      %1029 = vmatpush1.msra.mxu0 0.0
      %1030 = vmatprep.subr.mxu0 0.0
      %1031 = vmatpush1.msra.mxu0 0.0
      %1032 = vmatprep.subr.mxu0 0.0
      %1033 = vmatpush1.msra.mxu0 0.0
      %1034 = vmatprep.subr.mxu0 0.0
      %1035 = vmatpush1.msra.mxu0 0.0
      %1036 = vmatprep.subr.mxu0 0.0
      %1037 = vmatpush1.msra.mxu0 0.0
      %1038 = vmatprep.subr.mxu0 0.0
      %1039 = vmatpush1.msra.mxu0 0.0
      %1040 = vmatprep.subr.mxu0 0.0
      %1041 = vmatpush1.msra.mxu0 0.0
      %1042 = vmatprep.subr.mxu0 0.0
      %1043 = vmatpush1.msra.mxu0 0.0
      %1044 = vmatprep.subr.mxu0 0.0
      %1045 = vmatpush1.msra.mxu0 0.0
      %1046 = vmatprep.subr.mxu0 0.0
      %1047 = vmatpush1.msra.mxu0 0.0
      %1048 = vmatprep.subr.mxu0 0.0
      %1049 = vmatpush1.msra.mxu0 0.0
      %1050 = vmatprep.subr.mxu0 0.0
      %1051 = vmatpush1.msra.mxu0 0.0
      %1052 = vmatprep.subr.mxu0 0.0
      %1053 = vmatpush1.msra.mxu0 0.0
      %1054 = vmatprep.subr.mxu0 0.0
      %1055 = vmatpush1.msra.mxu0 0.0
      %1056 = vmatprep.subr.mxu0 0.0
      %1057 = vmatpush1.msra.mxu0 0.0
      %1058 = vmatprep.subr.mxu0 0.0
      %1059 = vmatpush1.msra.mxu0 0.0
      %1060 = vmatprep.mubr.f32.mxu0 0.0
      %1061 = vmatmul.mubr.f32.gmra.mrb[0].mxu0 %v823
      %v1062 = vpop.f32.mrb[0].mxu0
      %v1063 = vadd.f32 0.0, %v1062
      %v1064 = vpop.f32.mrb[0].mxu0
      %1065 = vmatprep.mubr.f32.mxu0 0.0
      %1066 = vmatmul.mubr.f32.gmra.mrb[0].mxu0 %v826
      %v1067 = vpop.f32.mrb[0].mxu0
      %v1068 = vadd.f32 0.0, %v1067
      %v1069 = vpop.f32.mrb[0].mxu0
      %1070 = vdwg.mxu0
      %v1072 = vsel %vm908, %v1063, 0
      %v1075 = vsel %vm908, %v1068, 0
      %1077 = vmatprep.subr.mxu0 0.0
      %1078 = vmatpush1.msra.mxu0 %v903
      %1079 = vmatprep.subr.mxu0 0.0
      %1080 = vmatpush1.msra.mxu0 %v904
      %1081 = vmatprep.subr.mxu0 0.0
      %1082 = vmatpush1.msra.mxu0 %v905
      %1083 = vmatprep.subr.mxu0 0.0
      %1084 = vmatpush1.msra.mxu0 %v906
      %1085 = vmatprep.subr.mxu0 0.0
      %1086 = vmatpush1.msra.mxu0 %v907
      %1087 = vmatprep.subr.mxu0 0.0
      %1088 = vmatpush1.msra.mxu0 0.0
      %1089 = vmatprep.subr.mxu0 0.0
      %1090 = vmatpush1.msra.mxu0 0.0
      %1091 = vmatprep.subr.mxu0 0.0
      %1092 = vmatpush1.msra.mxu0 0.0
      %1093 = vmatprep.subr.mxu0 0.0
      %1094 = vmatpush1.msra.mxu0 0.0
      %1095 = vmatprep.subr.mxu0 0.0
      %1096 = vmatpush1.msra.mxu0 0.0
      %1097 = vmatprep.subr.mxu0 0.0
      %1098 = vmatpush1.msra.mxu0 0.0
      %1099 = vmatprep.subr.mxu0 0.0
      %1100 = vmatpush1.msra.mxu0 0.0
      %1101 = vmatprep.subr.mxu0 0.0
      %1102 = vmatpush1.msra.mxu0 0.0
      %1103 = vmatprep.subr.mxu0 0.0
      %1104 = vmatpush1.msra.mxu0 0.0
      %1105 = vmatprep.subr.mxu0 0.0
      %1106 = vmatpush1.msra.mxu0 0.0
      %1107 = vmatprep.subr.mxu0 0.0
      %1108 = vmatpush1.msra.mxu0 0.0
      %1109 = vmatprep.subr.mxu0 0.0
      %1110 = vmatpush1.msra.mxu0 0.0
      %1111 = vmatprep.subr.mxu0 0.0
      %1112 = vmatpush1.msra.mxu0 0.0
      %1113 = vmatprep.subr.mxu0 0.0
      %1114 = vmatpush1.msra.mxu0 0.0
      %1115 = vmatprep.subr.mxu0 0.0
      %1116 = vmatpush1.msra.mxu0 0.0
      %1117 = vmatprep.subr.mxu0 0.0
      %1118 = vmatpush1.msra.mxu0 0.0
      %1119 = vmatprep.subr.mxu0 0.0
      %1120 = vmatpush1.msra.mxu0 0.0
      %1121 = vmatprep.subr.mxu0 0.0
      %1122 = vmatpush1.msra.mxu0 0.0
      %1123 = vmatprep.subr.mxu0 0.0
      %1124 = vmatpush1.msra.mxu0 0.0
      %1125 = vmatprep.subr.mxu0 0.0
      %1126 = vmatpush1.msra.mxu0 0.0
      %1127 = vmatprep.subr.mxu0 0.0
      %1128 = vmatpush1.msra.mxu0 0.0
      %1129 = vmatprep.subr.mxu0 0.0
      %1130 = vmatpush1.msra.mxu0 0.0
      %1131 = vmatprep.subr.mxu0 0.0
      %1132 = vmatpush1.msra.mxu0 0.0
      %1133 = vmatprep.subr.mxu0 0.0
      %1134 = vmatpush1.msra.mxu0 0.0
      %1135 = vmatprep.subr.mxu0 0.0
      %1136 = vmatpush1.msra.mxu0 0.0
      %1137 = vmatprep.subr.mxu0 0.0
      %1138 = vmatpush1.msra.mxu0 0.0
      %1139 = vmatprep.subr.mxu0 0.0
      %1140 = vmatpush1.msra.mxu0 0.0
      %1141 = vmatprep.mubr.f32.mxu0 0.0
      %1142 = vmatmul.mubr.f32.gmra.mrb[0].mxu0 %v1072
      %v1143 = vpop.f32.mrb[0].mxu0
      %v1144 = vadd.f32 0.0, %v1143
      %v1145 = vpop.f32.mrb[0].mxu0
      %1146 = vmatprep.mubr.f32.mxu0 0.0
      %1147 = vmatmul.mubr.f32.gmra.mrb[0].mxu0 %v1075
      %v1148 = vpop.f32.mrb[0].mxu0
      %v1149 = vadd.f32 0.0, %v1148
      %v1150 = vpop.f32.mrb[0].mxu0
      %1151 = vdwg.mxu0
      %v1152 = vmul.f32 %v1144, 0.03125
      %v1153 = vmul.f32 %v1149, 0.03125
      %v1154 = vadd.f32 %v1152, 1e-05
      %v1155 = vadd.f32 %v1153, 1e-05
      %v1156 = vrsqrt.pop %v1154
      %v1157 = vrsqrt.pop %v1155
      %v1158 = vmul.f32 %v992, %v1156
      %v1159 = vmul.f32 %v993, %v1157
      %v1160 = vld [vmem:[%s9] sm:$0xff]
      %v1161 = vld [vmem:[%s9 + $0x8] sm:$0xff]
      %v1162 = vld [vmem:[%s9 + $0x10] sm:$0xff]
      %v1163 = vld [vmem:[%s9 + $0x18] sm:$0xff]
      %v1164 = vld [vmem:[%s9 + $0x20] sm:$0xff]
      %v1165 = vld [vmem:[%s10] sm:$0x1]
      %v1167 = vlaneseq
      %v1168 = vshrl.u32 %v1167, 7
      %v1169 = vsub.s32 0, %v1168
      %v1170 = vrot.slane %v1165, %v1169
      %v1173 = vsel %vm908, %v1158, 0
      %v1176 = vsel %vm908, %v1159, 0
      %1178 = vmatprep.subr.mxu0 0.0
      %1179 = vmatpush1.msra.mxu0 %v1160
      %1180 = vmatprep.subr.mxu0 0.0
      %1181 = vmatpush1.msra.mxu0 %v1161
      %1182 = vmatprep.subr.mxu0 0.0
      %1183 = vmatpush1.msra.mxu0 %v1162
      %1184 = vmatprep.subr.mxu0 0.0
      %1185 = vmatpush1.msra.mxu0 %v1163
      %1186 = vmatprep.subr.mxu0 0.0
      %1187 = vmatpush1.msra.mxu0 %v1164
      %1188 = vmatprep.subr.mxu0 0.0
      %1189 = vmatpush1.msra.mxu0 0.0
      %1190 = vmatprep.subr.mxu0 0.0
      %1191 = vmatpush1.msra.mxu0 0.0
      %1192 = vmatprep.subr.mxu0 0.0
      %1193 = vmatpush1.msra.mxu0 0.0
      %1194 = vmatprep.subr.mxu0 0.0
      %1195 = vmatpush1.msra.mxu0 0.0
      %1196 = vmatprep.subr.mxu0 0.0
      %1197 = vmatpush1.msra.mxu0 0.0
      %1198 = vmatprep.subr.mxu0 0.0
      %1199 = vmatpush1.msra.mxu0 0.0
      %1200 = vmatprep.subr.mxu0 0.0
      %1201 = vmatpush1.msra.mxu0 0.0
      %1202 = vmatprep.subr.mxu0 0.0
      %1203 = vmatpush1.msra.mxu0 0.0
      %1204 = vmatprep.subr.mxu0 0.0
      %1205 = vmatpush1.msra.mxu0 0.0
      %1206 = vmatprep.subr.mxu0 0.0
      %1207 = vmatpush1.msra.mxu0 0.0
      %1208 = vmatprep.subr.mxu0 0.0
      %1209 = vmatpush1.msra.mxu0 0.0
      %1210 = vmatprep.subr.mxu0 0.0
      %1211 = vmatpush1.msra.mxu0 0.0
      %1212 = vmatprep.subr.mxu0 0.0
      %1213 = vmatpush1.msra.mxu0 0.0
      %1214 = vmatprep.subr.mxu0 0.0
      %1215 = vmatpush1.msra.mxu0 0.0
      %1216 = vmatprep.subr.mxu0 0.0
      %1217 = vmatpush1.msra.mxu0 0.0
      %1218 = vmatprep.subr.mxu0 0.0
      %1219 = vmatpush1.msra.mxu0 0.0
      %1220 = vmatprep.subr.mxu0 0.0
      %1221 = vmatpush1.msra.mxu0 0.0
      %1222 = vmatprep.subr.mxu0 0.0
      %1223 = vmatpush1.msra.mxu0 0.0
      %1224 = vmatprep.subr.mxu0 0.0
      %1225 = vmatpush1.msra.mxu0 0.0
      %1226 = vmatprep.subr.mxu0 0.0
      %1227 = vmatpush1.msra.mxu0 0.0
      %1228 = vmatprep.subr.mxu0 0.0
      %1229 = vmatpush1.msra.mxu0 0.0
      %1230 = vmatprep.subr.mxu0 0.0
      %1231 = vmatpush1.msra.mxu0 0.0
      %1232 = vmatprep.subr.mxu0 0.0
      %1233 = vmatpush1.msra.mxu0 0.0
      %1234 = vmatprep.subr.mxu0 0.0
      %1235 = vmatpush1.msra.mxu0 0.0
      %1236 = vmatprep.subr.mxu0 0.0
      %1237 = vmatpush1.msra.mxu0 0.0
      %1238 = vmatprep.subr.mxu0 0.0
      %1239 = vmatpush1.msra.mxu0 0.0
      %1240 = vmatprep.subr.mxu0 0.0
      %1241 = vmatpush1.msra.mxu0 0.0
      %1242 = vmatprep.mubr.f32.mxu0 0.0
      %1243 = vmatmul.mubr.f32.gmra.mrb[0].mxu0 %v1173
      %v1244 = vpop.f32.mrb[0].mxu0
      %v1245 = vadd.f32 %v1170, %v1244
      %v1246 = vpop.f32.mrb[0].mxu0
      %1247 = vmatprep.mubr.f32.mxu0 0.0
      %1248 = vmatmul.mubr.f32.gmra.mrb[0].mxu0 %v1176
      %v1249 = vpop.f32.mrb[0].mxu0
      %v1250 = vadd.f32 %v1170, %v1249
      %v1251 = vpop.f32.mrb[0].mxu0
      %1252 = vdwg.mxu0
      %1253 = vst [vmem:[%s388] sm:$0xff] %v1245
      %1254 = vst [vmem:[%s388 + $0x8] sm:$0xff] %v1250
      %s1255 = smul.u32 2, %s22
      %p1256 = scmp.lt.s32.totalorder %s1255, 3
      %s1257 = scalar_select %p1256, %s1255, 3
      %s1258 = smul.addr %s1257, 8
      %s1259 = scalar_lea.vmem %s11, %s1258
      // Predicated region
      $region65: #{_lambda_.1} parent=63 // pred_check
        %p1260 = pneg %p276
      $region66: #{_lambda_.1} parent=63 // pred_check_branch
        %1262 = sbr.rel (%p1260) target = $region68
      $region67: #{_lambda_.1} parent=63 // pred_region
        %s1263 = smul.u32 2, %s22
      $region68: #{_lambda_.1} parent=63 // pred_fallthru
        _
    $region64: #{_lambda_.1} parent=5 // pred_fallthru
      _
    %p1264 = scmp.le.s32.totalorder 2, %s17
    // Predicated region
    $region69: #{_lambda_.1} parent=5 // pred_check
      %p1265 = pneg %p1264
    $region70: #{_lambda_.1} parent=5 // pred_check_branch
      %1267 = sbr.rel (%p1265) target = $region72
    $region71: #{_lambda_.1} parent=5 // pred_region
      %s1268 = ssub.s32 %s17, 2
      // Predicated region
      $region73: #{_lambda_.1} parent=71 // pred_check
        %p1269 = pneg %p282
      $region74: #{_lambda_.1} parent=71 // pred_check_branch
        %1271 = sbr.rel (%p1269) target = $region76
      $region75: #{_lambda_.1} parent=71 // pred_region
        %s1272 = smul.u32 2, %s23
        %p1273 = scmp.lt.s32.totalorder %s1272, 3
        %s1274 = scalar_select %p1273, %s1272, 3
        %s1275 = smul.addr %s1274, 8
        %s1276 = scalar_lea.vmem %s11, %s1275
      $region76: #{_lambda_.1} parent=71 // pred_fallthru
        _
    $region72: #{_lambda_.1} parent=5 // pred_fallthru
      _
  $region6: #{_lambda_.1} parent=0 // loop_footer
    %s21 = sadd.s32 1, %s17
  $region7: #{_lambda_.1} parent=0 // loop_footer_branch
    %16 = sbr.rel target = $region3
  $region8: #{_lambda_.1} parent=0 // loop_exit
    _

</llo_original>
